<compile_context>
chip_gen: v7x
topology: tpu7x:2x2x1
jax: 0.10.0
libtpu: 0.0.40
codegen_flags: <defaults>
</compile_context>

<pallas_src>
import math
from functools import partial

import jax
import jax.numpy as jnp
from jax.experimental import pallas as pl
from jax.experimental.pallas import tpu as pltpu

NUM_HEADS = 4


# ----------------------------- kernel ---------------------------------------


def _layernorm(x, g, b, eps=1e-12):
    mu = jnp.mean(x, axis=-1, keepdims=True)
    var = jnp.mean((x - mu) ** 2, axis=-1, keepdims=True)
    return (x - mu) * jax.lax.rsqrt(var + eps) * g + b


def fused_bert_kernel(
    x_ref, eg_ref, eb_ref,                                   # embeddings + emb-LN
    wqkv_ref, bqkv_ref, wo_ref, bo_ref, g1_ref, be1_ref,      # attention block
    w1_ref, b1_ref, w2_ref, b2_ref, g2_ref, be2_ref,          # FFN block
    hw_ref, hb_ref,                                           # tagger head (lane-padded)
    out_ref,                                                  # [1, S, T_pad]
    h_ref,                                                    # VMEM scratch [S, H]
):
    """Grid = (batch, layer). One post-LN BERT layer per step; head fused at the end."""
    l = pl.program_id(1)

    # --- prologue: embedding layernorm, hidden state becomes VMEM-resident ---
    @pl.when(l == 0)
    def _():
        h_ref[...] = _layernorm(x_ref[0], eg_ref[...], eb_ref[...])

    x = h_ref[...]                      # [S, H], lives in VMEM across layers
    S, H = x.shape
    hd = H // NUM_HEADS
    scale = 1.0 / math.sqrt(hd)

    # --- fused QKV projection: one MXU pass with 3x wider N ------------------
    qkv = jnp.dot(x, wqkv_ref[0], preferred_element_type=jnp.float32) + bqkv_ref[0]

    # --- attention -----------------------------------------------------------
    # TODO(synk): with production head_dim (>=128 lanes) batch all heads via a
    # leading-head-axis einsum; at hd=8 the split is an intra-vreg relayout
    # either way, so a static unrolled loop with 2-D MXU dots is used and the
    # head-concat is folded into the output projection accumulation.
    wo = wo_ref[0]                      # [H, H]
    attn = bo_ref[0]                    # [1, H], broadcasts into the accumulation
    for h in range(NUM_HEADS):
        qh = qkv[:, h * hd:(h + 1) * hd]
        kh = qkv[:, H + h * hd:H + (h + 1) * hd]
        vh = qkv[:, 2 * H + h * hd:2 * H + (h + 1) * hd]
        # q @ k^T without an explicit transpose (contract last dims).
        s = jax.lax.dot_general(
            qh, kh, (((1,), (1,)), ((), ())),
            preferred_element_type=jnp.float32) * scale          # [S, S]
        s = s - jnp.max(s, axis=-1, keepdims=True)
        p = jnp.exp(s)
        p = p * pl.reciprocal(jnp.sum(p, axis=-1, keepdims=True), approx=True)
        ctx_h = jnp.dot(p, vh, preferred_element_type=jnp.float32)   # [S, hd]
        # Fold head concat into W_o: sublane-aligned slice, accumulate.
        attn = attn + jnp.dot(ctx_h, wo[h * hd:(h + 1) * hd, :],
                              preferred_element_type=jnp.float32)

    h1 = _layernorm(x + attn, g1_ref[0], be1_ref[0])

    # --- feed-forward ---------------------------------------------------------
    ff = jnp.dot(h1, w1_ref[0], preferred_element_type=jnp.float32) + b1_ref[0]
    # TODO(synk): HF BERT uses exact (erf) GELU; tanh approximation used for TPU lowering.
    ff = jax.nn.gelu(ff, approximate=True)
    ff = jnp.dot(ff, w2_ref[0], preferred_element_type=jnp.float32) + b2_ref[0]
    h2 = _layernorm(h1 + ff, g2_ref[0], be2_ref[0])

    h_ref[...] = h2

    # --- epilogue: fused tagger head, lane-dense (T padded to 128) ------------
    @pl.when(l == pl.num_programs(1) - 1)
    def _():
        out_ref[0] = (
            jnp.dot(h2, hw_ref[...], preferred_element_type=jnp.float32) + hb_ref[...]
        ).astype(out_ref.dtype)


# ----------------------------- wrapper ---------------------------------------


def _fused_encoder_and_head(x_emb, p):
    B, S, H = x_emb.shape
    L, _, H3 = p["wqkv"].shape
    F = p["w1"].shape[2]
    TP = p["head_w"].shape[1]           # lane-padded tag dim (128)

    bmap = lambda b, l: (b, 0, 0)       # per-batch blocks (resident across layers)
    lmap = lambda b, l: (l, 0, 0)       # per-layer stacked weights
    cmap = lambda b, l: (0, 0)          # constant (emb LN, head)

    grid_spec = pltpu.PrefetchScalarGridSpec(
        num_scalar_prefetch=0,
        grid=(B, L),
        in_specs=[
            pl.BlockSpec((1, S, H), bmap),      # embedded tokens
            pl.BlockSpec((1, H), cmap),         # emb LN gamma
            pl.BlockSpec((1, H), cmap),         # emb LN beta
            pl.BlockSpec((1, H, H3), lmap),     # wqkv
            pl.BlockSpec((1, 1, H3), lmap),     # bqkv
            pl.BlockSpec((1, H, H), lmap),      # wo
            pl.BlockSpec((1, 1, H), lmap),      # bo
            pl.BlockSpec((1, 1, H), lmap),      # ln1 gamma
            pl.BlockSpec((1, 1, H), lmap),      # ln1 beta
            pl.BlockSpec((1, H, F), lmap),      # ffn up
            pl.BlockSpec((1, 1, F), lmap),      # ffn up bias
            pl.BlockSpec((1, F, H), lmap),      # ffn down
            pl.BlockSpec((1, 1, H), lmap),      # ffn down bias
            pl.BlockSpec((1, 1, H), lmap),      # ln2 gamma
            pl.BlockSpec((1, 1, H), lmap),      # ln2 beta
            pl.BlockSpec((H, TP), cmap),        # tagger head weight (padded)
            pl.BlockSpec((1, TP), cmap),        # tagger head bias (padded)
        ],
        out_specs=pl.BlockSpec((1, S, TP), bmap),
        scratch_shapes=[pltpu.VMEM((S, H), jnp.float32)],
    )
    return pl.pallas_call(
        fused_bert_kernel,
        out_shape=jax.ShapeDtypeStruct((B, S, TP), jnp.float32),
        grid_spec=grid_spec,
        compiler_params=pltpu.CompilerParams(
            dimension_semantics=("parallel", "arbitrary")),
    )(
        x_emb, p["emb_ln_g"], p["emb_ln_b"],
        p["wqkv"], p["bqkv"], p["wo"], p["bo"], p["ln1_g"], p["ln1_b"],
        p["w1"], p["b1"], p["w2"], p["b2"], p["ln2_g"], p["ln2_b"],
        p["head_w"], p["head_b"],
    )


@partial(jax.jit, static_argnames=("num_tag",))
def bert_tagger_forward(token_ids, params, *, num_tag):
    B, S = token_ids.shape
    # Glue: token embedding gather + position embeddings (no clean Pallas tile form).
    x = jnp.take(params["tok_emb"], token_ids, axis=0) + params["pos_emb"][:S][None]
    logits_padded = _fused_encoder_and_head(x, params)
    return logits_padded[..., :num_tag]     # slice the lane padding back off


# ---------------------- synthetic parameter setup ----------------------------


def init_params(key, vocab, max_pos, H, FFN, T, num_layers, tag_pad=128):
    keys = iter(jax.random.split(key, 64))
    std = 0.02

    def w(shape):
        return (std * jax.random.normal(next(keys), shape)).astype(jnp.float32)

    wqkv, wo, w1, w2 = [], [], [], []
    for _ in range(num_layers):
        wqkv.append(jnp.concatenate([w((H, H)), w((H, H)), w((H, H))], axis=1))
        wo.append(w((H, H)))
        w1.append(w((H, FFN)))
        w2.append(w((FFN, H)))
    L = num_layers

    return {
        "tok_emb": w((vocab, H)),
        "pos_emb": w((max_pos, H)),
        "emb_ln_g": jnp.ones((1, H), jnp.float32),
        "emb_ln_b": jnp.zeros((1, H), jnp.float32),
        "wqkv": jnp.stack(wqkv),                                # [L, H, 3H]
        "bqkv": jnp.zeros((L, 1, 3 * H), jnp.float32),
        "wo": jnp.stack(wo),                                    # [L, H, H]
        "bo": jnp.zeros((L, 1, H), jnp.float32),
        "ln1_g": jnp.ones((L, 1, H), jnp.float32),
        "ln1_b": jnp.zeros((L, 1, H), jnp.float32),
        "w1": jnp.stack(w1),                                    # [L, H, FFN]
        "b1": jnp.zeros((L, 1, FFN), jnp.float32),
        "w2": jnp.stack(w2),                                    # [L, FFN, H]
        "b2": jnp.zeros((L, 1, H), jnp.float32),
        "ln2_g": jnp.ones((L, 1, H), jnp.float32),
        "ln2_b": jnp.zeros((L, 1, H), jnp.float32),
        # Tagger head padded to 128 lanes (zero columns) for unmasked stores.
        "head_w": jnp.pad(w((H, T)), ((0, 0), (0, tag_pad - T))),
        "head_b": jnp.zeros((1, tag_pad), jnp.float32),
    }


# ------------------------------- main ----------------------------------------

if __name__ == "__main__":
    B, S, H, FFN = 2, 8, 32, 64          # batch, seq, hidden_dim, ffn
    T = 5                                # num_tag
    VOCAB, MAX_POS, NUM_LAYERS = 100, 16, 2

    key = jax.random.PRNGKey(0)
    k_tok, k_param = jax.random.split(key)
    token_ids = jax.random.randint(k_tok, (B, S), 0, VOCAB, dtype=jnp.int32)
    params = init_params(k_param, VOCAB, MAX_POS, H, FFN, T, NUM_LAYERS)

    logits = bert_tagger_forward(token_ids, params, num_tag=T)
    jax.block_until_ready(logits)

    assert logits.shape == (B, S, T), logits.shape
    assert logits.dtype == jnp.float32
    assert bool(jnp.all(jnp.isfinite(logits)))
    print("KERNEL_OK")
</pallas_src>

<mosaic_0001>
module attributes {stable_mosaic.version = 11 : i64} {
  func.func @fused_bert_kernel(%arg0: i32, %arg1: i32, %arg2: memref<1x8x32xf32, #tpu.memory_space<vmem>>, %arg3: memref<1x32xf32, #tpu.memory_space<vmem>>, %arg4: memref<1x32xf32, #tpu.memory_space<vmem>>, %arg5: memref<1x32x96xf32, #tpu.memory_space<vmem>>, %arg6: memref<1x1x96xf32, #tpu.memory_space<vmem>>, %arg7: memref<1x32x32xf32, #tpu.memory_space<vmem>>, %arg8: memref<1x1x32xf32, #tpu.memory_space<vmem>>, %arg9: memref<1x1x32xf32, #tpu.memory_space<vmem>>, %arg10: memref<1x1x32xf32, #tpu.memory_space<vmem>>, %arg11: memref<1x32x64xf32, #tpu.memory_space<vmem>>, %arg12: memref<1x1x64xf32, #tpu.memory_space<vmem>>, %arg13: memref<1x64x32xf32, #tpu.memory_space<vmem>>, %arg14: memref<1x1x32xf32, #tpu.memory_space<vmem>>, %arg15: memref<1x1x32xf32, #tpu.memory_space<vmem>>, %arg16: memref<1x1x32xf32, #tpu.memory_space<vmem>>, %arg17: memref<32x128xf32, #tpu.memory_space<vmem>>, %arg18: memref<1x128xf32, #tpu.memory_space<vmem>>, %arg19: memref<1x8x128xf32, #tpu.memory_space<vmem>>, %arg20: memref<8x32xf32, #tpu.memory_space<vmem>>) attributes {dimension_semantics = [#tpu.dimension_semantics<parallel>, #tpu.dimension_semantics<arbitrary>], iteration_bounds = array<i64: 2, 2>, scalar_prefetch = 0 : i64, scratch_operands = 1 : i64, tpu.core_type = #tpu.core_type<tc>, window_params = [{transform_indices = @transform_0, window_bounds = array<i64: 1, 8, 32>}, {pipeline_mode = #tpu.pipeline_mode<synchronous>, transform_indices = @transform_1, window_bounds = array<i64: 1, 32>}, {pipeline_mode = #tpu.pipeline_mode<synchronous>, transform_indices = @transform_2, window_bounds = array<i64: 1, 32>}, {transform_indices = @transform_3, window_bounds = array<i64: 1, 32, 96>}, {transform_indices = @transform_4, window_bounds = array<i64: 1, 1, 96>}, {transform_indices = @transform_5, window_bounds = array<i64: 1, 32, 32>}, {transform_indices = @transform_6, window_bounds = array<i64: 1, 1, 32>}, {transform_indices = @transform_7, window_bounds = array<i64: 1, 1, 32>}, {transform_indices = @transform_8, window_bounds = array<i64: 1, 1, 32>}, {transform_indices = @transform_9, window_bounds = array<i64: 1, 32, 64>}, {transform_indices = @transform_10, window_bounds = array<i64: 1, 1, 64>}, {transform_indices = @transform_11, window_bounds = array<i64: 1, 64, 32>}, {transform_indices = @transform_12, window_bounds = array<i64: 1, 1, 32>}, {transform_indices = @transform_13, window_bounds = array<i64: 1, 1, 32>}, {transform_indices = @transform_14, window_bounds = array<i64: 1, 1, 32>}, {pipeline_mode = #tpu.pipeline_mode<synchronous>, transform_indices = @transform_15, window_bounds = array<i64: 32, 128>}, {pipeline_mode = #tpu.pipeline_mode<synchronous>, transform_indices = @transform_16, window_bounds = array<i64: 1, 128>}, {transform_indices = @transform_17, window_bounds = array<i64: 1, 8, 128>}]} {
    %c0_i32 = arith.constant 0 : i32
    %0 = arith.cmpi eq, %arg1, %c0_i32 : i32
    %1 = arith.extui %0 : i1 to i32
    %c0_i32_0 = arith.constant 0 : i32
    %2 = arith.cmpi ne, %1, %c0_i32_0 : i32
    scf.if %2 {
      %c0_81 = arith.constant 0 : index
      %c0_82 = arith.constant 0 : index
      %c0_83 = arith.constant 0 : index
      %181 = vector.load %arg2[%c0_81, %c0_82, %c0_83] : memref<1x8x32xf32, #tpu.memory_space<vmem>>, vector<1x8x32xf32>
      %182 = vector.shape_cast %181 : vector<1x8x32xf32> to vector<8x32xf32>
      %c0_84 = arith.constant 0 : index
      %c0_85 = arith.constant 0 : index
      %183 = vector.load %arg3[%c0_84, %c0_85] : memref<1x32xf32, #tpu.memory_space<vmem>>, vector<1x32xf32>
      %c0_86 = arith.constant 0 : index
      %c0_87 = arith.constant 0 : index
      %184 = vector.load %arg4[%c0_86, %c0_87] : memref<1x32xf32, #tpu.memory_space<vmem>>, vector<1x32xf32>
      %cst_88 = arith.constant dense<0.000000e+00> : vector<8xf32>
      %185 = vector.multi_reduction <add>, %182, %cst_88 [1] : vector<8x32xf32> to vector<8xf32>
      %186 = vector.shape_cast %185 : vector<8xf32> to vector<8x1xf32>
      %cst_89 = arith.constant 3.200000e+01 : f32
      %187 = vector.broadcast %cst_89 : f32 to vector<8x1xf32>
      %188 = arith.divf %186, %187 : vector<8x1xf32>
      %189 = vector.broadcast %188 : vector<8x1xf32> to vector<8x32xf32>
      %190 = arith.subf %182, %189 : vector<8x32xf32>
      %191 = arith.mulf %190, %190 : vector<8x32xf32>
      %cst_90 = arith.constant dense<0.000000e+00> : vector<8xf32>
      %192 = vector.multi_reduction <add>, %191, %cst_90 [1] : vector<8x32xf32> to vector<8xf32>
      %193 = vector.shape_cast %192 : vector<8xf32> to vector<8x1xf32>
      %cst_91 = arith.constant 3.200000e+01 : f32
      %194 = vector.broadcast %cst_91 : f32 to vector<8x1xf32>
      %195 = arith.divf %193, %194 : vector<8x1xf32>
      %196 = vector.broadcast %188 : vector<8x1xf32> to vector<8x32xf32>
      %197 = arith.subf %182, %196 : vector<8x32xf32>
      %cst_92 = arith.constant 9.99999996E-13 : f32
      %198 = vector.broadcast %cst_92 : f32 to vector<8x1xf32>
      %199 = arith.addf %195, %198 : vector<8x1xf32>
      %200 = math.rsqrt %199 : vector<8x1xf32>
      %201 = vector.broadcast %200 : vector<8x1xf32> to vector<8x32xf32>
      %202 = arith.mulf %197, %201 : vector<8x32xf32>
      %203 = vector.broadcast %183 : vector<1x32xf32> to vector<8x32xf32>
      %204 = arith.mulf %202, %203 : vector<8x32xf32>
      %205 = vector.broadcast %184 : vector<1x32xf32> to vector<8x32xf32>
      %206 = arith.addf %204, %205 : vector<8x32xf32>
      %c0_93 = arith.constant 0 : index
      %c0_94 = arith.constant 0 : index
      %207 = vector.load %arg20[%c0_93, %c0_94] : memref<8x32xf32, #tpu.memory_space<vmem>>, vector<8x32xf32>
      tpu.vector_store %arg20[%c0_93, %c0_94], %206 {strides = array<i32>} : memref<8x32xf32, #tpu.memory_space<vmem>>, vector<8x32xf32>,
    } else {
    }
    %c0 = arith.constant 0 : index
    %c0_1 = arith.constant 0 : index
    %3 = vector.load %arg20[%c0, %c0_1] : memref<8x32xf32, #tpu.memory_space<vmem>>, vector<8x32xf32>
    %c0_2 = arith.constant 0 : index
    %c0_3 = arith.constant 0 : index
    %c0_4 = arith.constant 0 : index
    %4 = vector.load %arg5[%c0_2, %c0_3, %c0_4] : memref<1x32x96xf32, #tpu.memory_space<vmem>>, vector<1x32x96xf32>
    %5 = vector.shape_cast %4 : vector<1x32x96xf32> to vector<32x96xf32>
    %cst = arith.constant dense<0.000000e+00> : vector<8x96xf32>
    %6 = tpu.matmul %3, %5, %cst {dimension_numbers = #tpu.dot_dimension_numbers<[1], [0], [0], [1], [0, 0, 1, 1], [], []>} : vector<8x32xf32>, vector<32x96xf32>, vector<8x96xf32> -> vector<8x96xf32>
    %c0_5 = arith.constant 0 : index
    %c0_6 = arith.constant 0 : index
    %c0_7 = arith.constant 0 : index
    %7 = vector.load %arg6[%c0_5, %c0_6, %c0_7] : memref<1x1x96xf32, #tpu.memory_space<vmem>>, vector<1x1x96xf32>
    %8 = vector.shape_cast %7 : vector<1x1x96xf32> to vector<1x96xf32>
    %9 = vector.broadcast %8 : vector<1x96xf32> to vector<8x96xf32>
    %10 = arith.addf %6, %9 : vector<8x96xf32>
    %c0_8 = arith.constant 0 : index
    %c0_9 = arith.constant 0 : index
    %c0_10 = arith.constant 0 : index
    %11 = vector.load %arg7[%c0_8, %c0_9, %c0_10] : memref<1x32x32xf32, #tpu.memory_space<vmem>>, vector<1x32x32xf32>
    %12 = vector.shape_cast %11 : vector<1x32x32xf32> to vector<32x32xf32>
    %c0_11 = arith.constant 0 : index
    %c0_12 = arith.constant 0 : index
    %c0_13 = arith.constant 0 : index
    %13 = vector.load %arg8[%c0_11, %c0_12, %c0_13] : memref<1x1x32xf32, #tpu.memory_space<vmem>>, vector<1x1x32xf32>
    %14 = vector.shape_cast %13 : vector<1x1x32xf32> to vector<1x32xf32>
    %15 = vector.extract_strided_slice %10 {offsets = [0, 0], sizes = [8, 8], strides = [1, 1]} : vector<8x96xf32> to vector<8x8xf32>
    %16 = vector.extract_strided_slice %10 {offsets = [0, 32], sizes = [8, 8], strides = [1, 1]} : vector<8x96xf32> to vector<8x8xf32>
    %17 = vector.extract_strided_slice %10 {offsets = [0, 64], sizes = [8, 8], strides = [1, 1]} : vector<8x96xf32> to vector<8x8xf32>
    %cst_14 = arith.constant dense<0.000000e+00> : vector<8x8xf32>
    %18 = tpu.matmul %15, %16, %cst_14 {dimension_numbers = #tpu.dot_dimension_numbers<[1], [1], [0], [0], [0, 0, 1, 0], [], []>} : vector<8x8xf32>, vector<8x8xf32>, vector<8x8xf32> -> vector<8x8xf32>
    %cst_15 = arith.constant 0.353553385 : f32
    %19 = vector.broadcast %cst_15 : f32 to vector<8x8xf32>
    %20 = arith.mulf %18, %19 : vector<8x8xf32>
    %cst_16 = arith.constant dense<0xFF800000> : vector<8xf32>
    %21 = vector.multi_reduction <maximumf>, %20, %cst_16 [1] : vector<8x8xf32> to vector<8xf32>
    %22 = vector.shape_cast %21 : vector<8xf32> to vector<8x1xf32>
    %23 = vector.broadcast %22 : vector<8x1xf32> to vector<8x8xf32>
    %24 = arith.subf %20, %23 : vector<8x8xf32>
    %25 = math.exp %24 : vector<8x8xf32>
    %cst_17 = arith.constant dense<0.000000e+00> : vector<8xf32>
    %26 = vector.multi_reduction <add>, %25, %cst_17 [1] : vector<8x8xf32> to vector<8xf32>
    %27 = vector.shape_cast %26 : vector<8xf32> to vector<8x1xf32>
    %28 = tpu.reciprocal %27 {approx = true} : vector<8x1xf32> -> vector<8x1xf32>
    %29 = vector.broadcast %28 : vector<8x1xf32> to vector<8x8xf32>
    %30 = arith.mulf %25, %29 : vector<8x8xf32>
    %cst_18 = arith.constant dense<0.000000e+00> : vector<8x8xf32>
    %31 = tpu.matmul %30, %17, %cst_18 {dimension_numbers = #tpu.dot_dimension_numbers<[1], [0], [0], [1], [0, 0, 1, 1], [], []>} : vector<8x8xf32>, vector<8x8xf32>, vector<8x8xf32> -> vector<8x8xf32>
    %32 = vector.extract_strided_slice %12 {offsets = [0, 0], sizes = [8, 32], strides = [1, 1]} : vector<32x32xf32> to vector<8x32xf32>
    %cst_19 = arith.constant dense<0.000000e+00> : vector<8x32xf32>
    %33 = tpu.matmul %31, %32, %cst_19 {dimension_numbers = #tpu.dot_dimension_numbers<[1], [0], [0], [1], [0, 0, 1, 1], [], []>} : vector<8x8xf32>, vector<8x32xf32>, vector<8x32xf32> -> vector<8x32xf32>
    %34 = vector.broadcast %14 : vector<1x32xf32> to vector<8x32xf32>
    %35 = arith.addf %34, %33 : vector<8x32xf32>
    %36 = vector.extract_strided_slice %10 {offsets = [0, 8], sizes = [8, 8], strides = [1, 1]} : vector<8x96xf32> to vector<8x8xf32>
    %37 = vector.extract_strided_slice %10 {offsets = [0, 40], sizes = [8, 8], strides = [1, 1]} : vector<8x96xf32> to vector<8x8xf32>
    %38 = vector.extract_strided_slice %10 {offsets = [0, 72], sizes = [8, 8], strides = [1, 1]} : vector<8x96xf32> to vector<8x8xf32>
    %cst_20 = arith.constant dense<0.000000e+00> : vector<8x8xf32>
    %39 = tpu.matmul %36, %37, %cst_20 {dimension_numbers = #tpu.dot_dimension_numbers<[1], [1], [0], [0], [0, 0, 1, 0], [], []>} : vector<8x8xf32>, vector<8x8xf32>, vector<8x8xf32> -> vector<8x8xf32>
    %cst_21 = arith.constant 0.353553385 : f32
    %40 = vector.broadcast %cst_21 : f32 to vector<8x8xf32>
    %41 = arith.mulf %39, %40 : vector<8x8xf32>
    %cst_22 = arith.constant dense<0xFF800000> : vector<8xf32>
    %42 = vector.multi_reduction <maximumf>, %41, %cst_22 [1] : vector<8x8xf32> to vector<8xf32>
    %43 = vector.shape_cast %42 : vector<8xf32> to vector<8x1xf32>
    %44 = vector.broadcast %43 : vector<8x1xf32> to vector<8x8xf32>
    %45 = arith.subf %41, %44 : vector<8x8xf32>
    %46 = math.exp %45 : vector<8x8xf32>
    %cst_23 = arith.constant dense<0.000000e+00> : vector<8xf32>
    %47 = vector.multi_reduction <add>, %46, %cst_23 [1] : vector<8x8xf32> to vector<8xf32>
    %48 = vector.shape_cast %47 : vector<8xf32> to vector<8x1xf32>
    %49 = tpu.reciprocal %48 {approx = true} : vector<8x1xf32> -> vector<8x1xf32>
    %50 = vector.broadcast %49 : vector<8x1xf32> to vector<8x8xf32>
    %51 = arith.mulf %46, %50 : vector<8x8xf32>
    %cst_24 = arith.constant dense<0.000000e+00> : vector<8x8xf32>
    %52 = tpu.matmul %51, %38, %cst_24 {dimension_numbers = #tpu.dot_dimension_numbers<[1], [0], [0], [1], [0, 0, 1, 1], [], []>} : vector<8x8xf32>, vector<8x8xf32>, vector<8x8xf32> -> vector<8x8xf32>
    %53 = vector.extract_strided_slice %12 {offsets = [8, 0], sizes = [8, 32], strides = [1, 1]} : vector<32x32xf32> to vector<8x32xf32>
    %cst_25 = arith.constant dense<0.000000e+00> : vector<8x32xf32>
    %54 = tpu.matmul %52, %53, %cst_25 {dimension_numbers = #tpu.dot_dimension_numbers<[1], [0], [0], [1], [0, 0, 1, 1], [], []>} : vector<8x8xf32>, vector<8x32xf32>, vector<8x32xf32> -> vector<8x32xf32>
    %55 = arith.addf %35, %54 : vector<8x32xf32>
    %56 = vector.extract_strided_slice %10 {offsets = [0, 16], sizes = [8, 8], strides = [1, 1]} : vector<8x96xf32> to vector<8x8xf32>
    %57 = vector.extract_strided_slice %10 {offsets = [0, 48], sizes = [8, 8], strides = [1, 1]} : vector<8x96xf32> to vector<8x8xf32>
    %58 = vector.extract_strided_slice %10 {offsets = [0, 80], sizes = [8, 8], strides = [1, 1]} : vector<8x96xf32> to vector<8x8xf32>
    %cst_26 = arith.constant dense<0.000000e+00> : vector<8x8xf32>
    %59 = tpu.matmul %56, %57, %cst_26 {dimension_numbers = #tpu.dot_dimension_numbers<[1], [1], [0], [0], [0, 0, 1, 0], [], []>} : vector<8x8xf32>, vector<8x8xf32>, vector<8x8xf32> -> vector<8x8xf32>
    %cst_27 = arith.constant 0.353553385 : f32
    %60 = vector.broadcast %cst_27 : f32 to vector<8x8xf32>
    %61 = arith.mulf %59, %60 : vector<8x8xf32>
    %cst_28 = arith.constant dense<0xFF800000> : vector<8xf32>
    %62 = vector.multi_reduction <maximumf>, %61, %cst_28 [1] : vector<8x8xf32> to vector<8xf32>
    %63 = vector.shape_cast %62 : vector<8xf32> to vector<8x1xf32>
    %64 = vector.broadcast %63 : vector<8x1xf32> to vector<8x8xf32>
    %65 = arith.subf %61, %64 : vector<8x8xf32>
    %66 = math.exp %65 : vector<8x8xf32>
    %cst_29 = arith.constant dense<0.000000e+00> : vector<8xf32>
    %67 = vector.multi_reduction <add>, %66, %cst_29 [1] : vector<8x8xf32> to vector<8xf32>
    %68 = vector.shape_cast %67 : vector<8xf32> to vector<8x1xf32>
    %69 = tpu.reciprocal %68 {approx = true} : vector<8x1xf32> -> vector<8x1xf32>
    %70 = vector.broadcast %69 : vector<8x1xf32> to vector<8x8xf32>
    %71 = arith.mulf %66, %70 : vector<8x8xf32>
    %cst_30 = arith.constant dense<0.000000e+00> : vector<8x8xf32>
    %72 = tpu.matmul %71, %58, %cst_30 {dimension_numbers = #tpu.dot_dimension_numbers<[1], [0], [0], [1], [0, 0, 1, 1], [], []>} : vector<8x8xf32>, vector<8x8xf32>, vector<8x8xf32> -> vector<8x8xf32>
    %73 = vector.extract_strided_slice %12 {offsets = [16, 0], sizes = [8, 32], strides = [1, 1]} : vector<32x32xf32> to vector<8x32xf32>
    %cst_31 = arith.constant dense<0.000000e+00> : vector<8x32xf32>
    %74 = tpu.matmul %72, %73, %cst_31 {dimension_numbers = #tpu.dot_dimension_numbers<[1], [0], [0], [1], [0, 0, 1, 1], [], []>} : vector<8x8xf32>, vector<8x32xf32>, vector<8x32xf32> -> vector<8x32xf32>
    %75 = arith.addf %55, %74 : vector<8x32xf32>
    %76 = vector.extract_strided_slice %10 {offsets = [0, 24], sizes = [8, 8], strides = [1, 1]} : vector<8x96xf32> to vector<8x8xf32>
    %77 = vector.extract_strided_slice %10 {offsets = [0, 56], sizes = [8, 8], strides = [1, 1]} : vector<8x96xf32> to vector<8x8xf32>
    %78 = vector.extract_strided_slice %10 {offsets = [0, 88], sizes = [8, 8], strides = [1, 1]} : vector<8x96xf32> to vector<8x8xf32>
    %cst_32 = arith.constant dense<0.000000e+00> : vector<8x8xf32>
    %79 = tpu.matmul %76, %77, %cst_32 {dimension_numbers = #tpu.dot_dimension_numbers<[1], [1], [0], [0], [0, 0, 1, 0], [], []>} : vector<8x8xf32>, vector<8x8xf32>, vector<8x8xf32> -> vector<8x8xf32>
    %cst_33 = arith.constant 0.353553385 : f32
    %80 = vector.broadcast %cst_33 : f32 to vector<8x8xf32>
    %81 = arith.mulf %79, %80 : vector<8x8xf32>
    %cst_34 = arith.constant dense<0xFF800000> : vector<8xf32>
    %82 = vector.multi_reduction <maximumf>, %81, %cst_34 [1] : vector<8x8xf32> to vector<8xf32>
    %83 = vector.shape_cast %82 : vector<8xf32> to vector<8x1xf32>
    %84 = vector.broadcast %83 : vector<8x1xf32> to vector<8x8xf32>
    %85 = arith.subf %81, %84 : vector<8x8xf32>
    %86 = math.exp %85 : vector<8x8xf32>
    %cst_35 = arith.constant dense<0.000000e+00> : vector<8xf32>
    %87 = vector.multi_reduction <add>, %86, %cst_35 [1] : vector<8x8xf32> to vector<8xf32>
    %88 = vector.shape_cast %87 : vector<8xf32> to vector<8x1xf32>
    %89 = tpu.reciprocal %88 {approx = true} : vector<8x1xf32> -> vector<8x1xf32>
    %90 = vector.broadcast %89 : vector<8x1xf32> to vector<8x8xf32>
    %91 = arith.mulf %86, %90 : vector<8x8xf32>
    %cst_36 = arith.constant dense<0.000000e+00> : vector<8x8xf32>
    %92 = tpu.matmul %91, %78, %cst_36 {dimension_numbers = #tpu.dot_dimension_numbers<[1], [0], [0], [1], [0, 0, 1, 1], [], []>} : vector<8x8xf32>, vector<8x8xf32>, vector<8x8xf32> -> vector<8x8xf32>
    %93 = vector.extract_strided_slice %12 {offsets = [24, 0], sizes = [8, 32], strides = [1, 1]} : vector<32x32xf32> to vector<8x32xf32>
    %cst_37 = arith.constant dense<0.000000e+00> : vector<8x32xf32>
    %94 = tpu.matmul %92, %93, %cst_37 {dimension_numbers = #tpu.dot_dimension_numbers<[1], [0], [0], [1], [0, 0, 1, 1], [], []>} : vector<8x8xf32>, vector<8x32xf32>, vector<8x32xf32> -> vector<8x32xf32>
    %95 = arith.addf %75, %94 : vector<8x32xf32>
    %96 = arith.addf %3, %95 : vector<8x32xf32>
    %c0_38 = arith.constant 0 : index
    %c0_39 = arith.constant 0 : index
    %c0_40 = arith.constant 0 : index
    %97 = vector.load %arg9[%c0_38, %c0_39, %c0_40] : memref<1x1x32xf32, #tpu.memory_space<vmem>>, vector<1x1x32xf32>
    %98 = vector.shape_cast %97 : vector<1x1x32xf32> to vector<1x32xf32>
    %c0_41 = arith.constant 0 : index
    %c0_42 = arith.constant 0 : index
    %c0_43 = arith.constant 0 : index
    %99 = vector.load %arg10[%c0_41, %c0_42, %c0_43] : memref<1x1x32xf32, #tpu.memory_space<vmem>>, vector<1x1x32xf32>
    %100 = vector.shape_cast %99 : vector<1x1x32xf32> to vector<1x32xf32>
    %cst_44 = arith.constant dense<0.000000e+00> : vector<8xf32>
    %101 = vector.multi_reduction <add>, %96, %cst_44 [1] : vector<8x32xf32> to vector<8xf32>
    %102 = vector.shape_cast %101 : vector<8xf32> to vector<8x1xf32>
    %cst_45 = arith.constant 3.200000e+01 : f32
    %103 = vector.broadcast %cst_45 : f32 to vector<8x1xf32>
    %104 = arith.divf %102, %103 : vector<8x1xf32>
    %105 = vector.broadcast %104 : vector<8x1xf32> to vector<8x32xf32>
    %106 = arith.subf %96, %105 : vector<8x32xf32>
    %107 = arith.mulf %106, %106 : vector<8x32xf32>
    %cst_46 = arith.constant dense<0.000000e+00> : vector<8xf32>
    %108 = vector.multi_reduction <add>, %107, %cst_46 [1] : vector<8x32xf32> to vector<8xf32>
    %109 = vector.shape_cast %108 : vector<8xf32> to vector<8x1xf32>
    %cst_47 = arith.constant 3.200000e+01 : f32
    %110 = vector.broadcast %cst_47 : f32 to vector<8x1xf32>
    %111 = arith.divf %109, %110 : vector<8x1xf32>
    %112 = vector.broadcast %104 : vector<8x1xf32> to vector<8x32xf32>
    %113 = arith.subf %96, %112 : vector<8x32xf32>
    %cst_48 = arith.constant 9.99999996E-13 : f32
    %114 = vector.broadcast %cst_48 : f32 to vector<8x1xf32>
    %115 = arith.addf %111, %114 : vector<8x1xf32>
    %116 = math.rsqrt %115 : vector<8x1xf32>
    %117 = vector.broadcast %116 : vector<8x1xf32> to vector<8x32xf32>
    %118 = arith.mulf %113, %117 : vector<8x32xf32>
    %119 = vector.broadcast %98 : vector<1x32xf32> to vector<8x32xf32>
    %120 = arith.mulf %118, %119 : vector<8x32xf32>
    %121 = vector.broadcast %100 : vector<1x32xf32> to vector<8x32xf32>
    %122 = arith.addf %120, %121 : vector<8x32xf32>
    %c0_49 = arith.constant 0 : index
    %c0_50 = arith.constant 0 : index
    %c0_51 = arith.constant 0 : index
    %123 = vector.load %arg11[%c0_49, %c0_50, %c0_51] : memref<1x32x64xf32, #tpu.memory_space<vmem>>, vector<1x32x64xf32>
    %124 = vector.shape_cast %123 : vector<1x32x64xf32> to vector<32x64xf32>
    %cst_52 = arith.constant dense<0.000000e+00> : vector<8x64xf32>
    %125 = tpu.matmul %122, %124, %cst_52 {dimension_numbers = #tpu.dot_dimension_numbers<[1], [0], [0], [1], [0, 0, 1, 1], [], []>} : vector<8x32xf32>, vector<32x64xf32>, vector<8x64xf32> -> vector<8x64xf32>
    %c0_53 = arith.constant 0 : index
    %c0_54 = arith.constant 0 : index
    %c0_55 = arith.constant 0 : index
    %126 = vector.load %arg12[%c0_53, %c0_54, %c0_55] : memref<1x1x64xf32, #tpu.memory_space<vmem>>, vector<1x1x64xf32>
    %127 = vector.shape_cast %126 : vector<1x1x64xf32> to vector<1x64xf32>
    %128 = vector.broadcast %127 : vector<1x64xf32> to vector<8x64xf32>
    %129 = arith.addf %125, %128 : vector<8x64xf32>
    %130 = arith.mulf %129, %129 : vector<8x64xf32>
    %131 = arith.mulf %129, %130 : vector<8x64xf32>
    %cst_56 = arith.constant 4.471500e-02 : f32
    %132 = vector.broadcast %cst_56 : f32 to vector<8x64xf32>
    %133 = arith.mulf %132, %131 : vector<8x64xf32>
    %134 = arith.addf %129, %133 : vector<8x64xf32>
    %cst_57 = arith.constant 0.797884583 : f32
    %135 = vector.broadcast %cst_57 : f32 to vector<8x64xf32>
    %136 = arith.mulf %135, %134 : vector<8x64xf32>
    %137 = math.tanh %136 : vector<8x64xf32>
    %cst_58 = arith.constant 1.000000e+00 : f32
    %138 = vector.broadcast %cst_58 : f32 to vector<8x64xf32>
    %139 = arith.addf %138, %137 : vector<8x64xf32>
    %cst_59 = arith.constant 5.000000e-01 : f32
    %140 = vector.broadcast %cst_59 : f32 to vector<8x64xf32>
    %141 = arith.mulf %140, %139 : vector<8x64xf32>
    %142 = arith.mulf %129, %141 : vector<8x64xf32>
    %c0_60 = arith.constant 0 : index
    %c0_61 = arith.constant 0 : index
    %c0_62 = arith.constant 0 : index
    %143 = vector.load %arg13[%c0_60, %c0_61, %c0_62] : memref<1x64x32xf32, #tpu.memory_space<vmem>>, vector<1x64x32xf32>
    %144 = vector.shape_cast %143 : vector<1x64x32xf32> to vector<64x32xf32>
    %cst_63 = arith.constant dense<0.000000e+00> : vector<8x32xf32>
    %145 = tpu.matmul %142, %144, %cst_63 {dimension_numbers = #tpu.dot_dimension_numbers<[1], [0], [0], [1], [0, 0, 1, 1], [], []>} : vector<8x64xf32>, vector<64x32xf32>, vector<8x32xf32> -> vector<8x32xf32>
    %c0_64 = arith.constant 0 : index
    %c0_65 = arith.constant 0 : index
    %c0_66 = arith.constant 0 : index
    %146 = vector.load %arg14[%c0_64, %c0_65, %c0_66] : memref<1x1x32xf32, #tpu.memory_space<vmem>>, vector<1x1x32xf32>
    %147 = vector.shape_cast %146 : vector<1x1x32xf32> to vector<1x32xf32>
    %148 = vector.broadcast %147 : vector<1x32xf32> to vector<8x32xf32>
    %149 = arith.addf %145, %148 : vector<8x32xf32>
    %150 = arith.addf %122, %149 : vector<8x32xf32>
    %c0_67 = arith.constant 0 : index
    %c0_68 = arith.constant 0 : index
    %c0_69 = arith.constant 0 : index
    %151 = vector.load %arg15[%c0_67, %c0_68, %c0_69] : memref<1x1x32xf32, #tpu.memory_space<vmem>>, vector<1x1x32xf32>
    %152 = vector.shape_cast %151 : vector<1x1x32xf32> to vector<1x32xf32>
    %c0_70 = arith.constant 0 : index
    %c0_71 = arith.constant 0 : index
    %c0_72 = arith.constant 0 : index
    %153 = vector.load %arg16[%c0_70, %c0_71, %c0_72] : memref<1x1x32xf32, #tpu.memory_space<vmem>>, vector<1x1x32xf32>
    %154 = vector.shape_cast %153 : vector<1x1x32xf32> to vector<1x32xf32>
    %cst_73 = arith.constant dense<0.000000e+00> : vector<8xf32>
    %155 = vector.multi_reduction <add>, %150, %cst_73 [1] : vector<8x32xf32> to vector<8xf32>
    %156 = vector.shape_cast %155 : vector<8xf32> to vector<8x1xf32>
    %cst_74 = arith.constant 3.200000e+01 : f32
    %157 = vector.broadcast %cst_74 : f32 to vector<8x1xf32>
    %158 = arith.divf %156, %157 : vector<8x1xf32>
    %159 = vector.broadcast %158 : vector<8x1xf32> to vector<8x32xf32>
    %160 = arith.subf %150, %159 : vector<8x32xf32>
    %161 = arith.mulf %160, %160 : vector<8x32xf32>
    %cst_75 = arith.constant dense<0.000000e+00> : vector<8xf32>
    %162 = vector.multi_reduction <add>, %161, %cst_75 [1] : vector<8x32xf32> to vector<8xf32>
    %163 = vector.shape_cast %162 : vector<8xf32> to vector<8x1xf32>
    %cst_76 = arith.constant 3.200000e+01 : f32
    %164 = vector.broadcast %cst_76 : f32 to vector<8x1xf32>
    %165 = arith.divf %163, %164 : vector<8x1xf32>
    %166 = vector.broadcast %158 : vector<8x1xf32> to vector<8x32xf32>
    %167 = arith.subf %150, %166 : vector<8x32xf32>
    %cst_77 = arith.constant 9.99999996E-13 : f32
    %168 = vector.broadcast %cst_77 : f32 to vector<8x1xf32>
    %169 = arith.addf %165, %168 : vector<8x1xf32>
    %170 = math.rsqrt %169 : vector<8x1xf32>
    %171 = vector.broadcast %170 : vector<8x1xf32> to vector<8x32xf32>
    %172 = arith.mulf %167, %171 : vector<8x32xf32>
    %173 = vector.broadcast %152 : vector<1x32xf32> to vector<8x32xf32>
    %174 = arith.mulf %172, %173 : vector<8x32xf32>
    %175 = vector.broadcast %154 : vector<1x32xf32> to vector<8x32xf32>
    %176 = arith.addf %174, %175 : vector<8x32xf32>
    %c0_78 = arith.constant 0 : index
    %c0_79 = arith.constant 0 : index
    %177 = vector.load %arg20[%c0_78, %c0_79] : memref<8x32xf32, #tpu.memory_space<vmem>>, vector<8x32xf32>
    tpu.vector_store %arg20[%c0_78, %c0_79], %176 {strides = array<i32>} : memref<8x32xf32, #tpu.memory_space<vmem>>, vector<8x32xf32>,
    %c1_i32 = arith.constant 1 : i32
    %178 = arith.cmpi eq, %arg1, %c1_i32 : i32
    %179 = arith.extui %178 : i1 to i32
    %c0_i32_80 = arith.constant 0 : i32
    %180 = arith.cmpi ne, %179, %c0_i32_80 : i32
    scf.if %180 {
      %c0_81 = arith.constant 0 : index
      %c0_82 = arith.constant 0 : index
      %181 = vector.load %arg17[%c0_81, %c0_82] : memref<32x128xf32, #tpu.memory_space<vmem>>, vector<32x128xf32>
      %cst_83 = arith.constant dense<0.000000e+00> : vector<8x128xf32>
      %182 = tpu.matmul %176, %181, %cst_83 {dimension_numbers = #tpu.dot_dimension_numbers<[1], [0], [0], [1], [0, 0, 1, 1], [], []>} : vector<8x32xf32>, vector<32x128xf32>, vector<8x128xf32> -> vector<8x128xf32>
      %c0_84 = arith.constant 0 : index
      %c0_85 = arith.constant 0 : index
      %183 = vector.load %arg18[%c0_84, %c0_85] : memref<1x128xf32, #tpu.memory_space<vmem>>, vector<1x128xf32>
      %184 = vector.broadcast %183 : vector<1x128xf32> to vector<8x128xf32>
      %185 = arith.addf %182, %184 : vector<8x128xf32>
      %c0_86 = arith.constant 0 : index
      %c0_87 = arith.constant 0 : index
      %c0_88 = arith.constant 0 : index
      %186 = vector.load %arg19[%c0_86, %c0_87, %c0_88] : memref<1x8x128xf32, #tpu.memory_space<vmem>>, vector<1x8x128xf32>
      %187 = vector.shape_cast %186 : vector<1x8x128xf32> to vector<8x128xf32>
      %188 = vector.shape_cast %185 : vector<8x128xf32> to vector<1x8x128xf32>
      tpu.vector_store %arg19[%c0_86, %c0_87, %c0_88], %188 {strides = array<i32>} : memref<1x8x128xf32, #tpu.memory_space<vmem>>, vector<1x8x128xf32>,
    } else {
    }
    return
  }
  func.func @transform_0(%arg0: i32, %arg1: i32) -> (i32, i32, i32) {
    %c0_i32 = arith.constant 0 : i32
    %c0_i32_0 = arith.constant 0 : i32
    %c0_i32_1 = arith.constant 0 : i32
    return %arg0, %c0_i32, %c0_i32_0 : i32, i32, i32
  }
  func.func @transform_1(%arg0: i32, %arg1: i32) -> (i32, i32) {
    %c0_i32 = arith.constant 0 : i32
    %c0_i32_0 = arith.constant 0 : i32
    %c0_i32_1 = arith.constant 0 : i32
    return %c0_i32, %c0_i32_0 : i32, i32
  }
  func.func @transform_2(%arg0: i32, %arg1: i32) -> (i32, i32) {
    %c0_i32 = arith.constant 0 : i32
    %c0_i32_0 = arith.constant 0 : i32
    %c0_i32_1 = arith.constant 0 : i32
    return %c0_i32, %c0_i32_0 : i32, i32
  }
  func.func @transform_3(%arg0: i32, %arg1: i32) -> (i32, i32, i32) {
    %c0_i32 = arith.constant 0 : i32
    %c0_i32_0 = arith.constant 0 : i32
    %c0_i32_1 = arith.constant 0 : i32
    return %arg1, %c0_i32, %c0_i32_0 : i32, i32, i32
  }
  func.func @transform_4(%arg0: i32, %arg1: i32) -> (i32, i32, i32) {
    %c0_i32 = arith.constant 0 : i32
    %c0_i32_0 = arith.constant 0 : i32
    %c0_i32_1 = arith.constant 0 : i32
    return %arg1, %c0_i32, %c0_i32_0 : i32, i32, i32
  }
  func.func @transform_5(%arg0: i32, %arg1: i32) -> (i32, i32, i32) {
    %c0_i32 = arith.constant 0 : i32
    %c0_i32_0 = arith.constant 0 : i32
    %c0_i32_1 = arith.constant 0 : i32
    return %arg1, %c0_i32, %c0_i32_0 : i32, i32, i32
  }
  func.func @transform_6(%arg0: i32, %arg1: i32) -> (i32, i32, i32) {
    %c0_i32 = arith.constant 0 : i32
    %c0_i32_0 = arith.constant 0 : i32
    %c0_i32_1 = arith.constant 0 : i32
    return %arg1, %c0_i32, %c0_i32_0 : i32, i32, i32
  }
  func.func @transform_7(%arg0: i32, %arg1: i32) -> (i32, i32, i32) {
    %c0_i32 = arith.constant 0 : i32
    %c0_i32_0 = arith.constant 0 : i32
    %c0_i32_1 = arith.constant 0 : i32
    return %arg1, %c0_i32, %c0_i32_0 : i32, i32, i32
  }
  func.func @transform_8(%arg0: i32, %arg1: i32) -> (i32, i32, i32) {
    %c0_i32 = arith.constant 0 : i32
    %c0_i32_0 = arith.constant 0 : i32
    %c0_i32_1 = arith.constant 0 : i32
    return %arg1, %c0_i32, %c0_i32_0 : i32, i32, i32
  }
  func.func @transform_9(%arg0: i32, %arg1: i32) -> (i32, i32, i32) {
    %c0_i32 = arith.constant 0 : i32
    %c0_i32_0 = arith.constant 0 : i32
    %c0_i32_1 = arith.constant 0 : i32
    return %arg1, %c0_i32, %c0_i32_0 : i32, i32, i32
  }
  func.func @transform_10(%arg0: i32, %arg1: i32) -> (i32, i32, i32) {
    %c0_i32 = arith.constant 0 : i32
    %c0_i32_0 = arith.constant 0 : i32
    %c0_i32_1 = arith.constant 0 : i32
    return %arg1, %c0_i32, %c0_i32_0 : i32, i32, i32
  }
  func.func @transform_11(%arg0: i32, %arg1: i32) -> (i32, i32, i32) {
    %c0_i32 = arith.constant 0 : i32
    %c0_i32_0 = arith.constant 0 : i32
    %c0_i32_1 = arith.constant 0 : i32
    return %arg1, %c0_i32, %c0_i32_0 : i32, i32, i32
  }
  func.func @transform_12(%arg0: i32, %arg1: i32) -> (i32, i32, i32) {
    %c0_i32 = arith.constant 0 : i32
    %c0_i32_0 = arith.constant 0 : i32
    %c0_i32_1 = arith.constant 0 : i32
    return %arg1, %c0_i32, %c0_i32_0 : i32, i32, i32
  }
  func.func @transform_13(%arg0: i32, %arg1: i32) -> (i32, i32, i32) {
    %c0_i32 = arith.constant 0 : i32
    %c0_i32_0 = arith.constant 0 : i32
    %c0_i32_1 = arith.constant 0 : i32
    return %arg1, %c0_i32, %c0_i32_0 : i32, i32, i32
  }
  func.func @transform_14(%arg0: i32, %arg1: i32) -> (i32, i32, i32) {
    %c0_i32 = arith.constant 0 : i32
    %c0_i32_0 = arith.constant 0 : i32
    %c0_i32_1 = arith.constant 0 : i32
    return %arg1, %c0_i32, %c0_i32_0 : i32, i32, i32
  }
  func.func @transform_15(%arg0: i32, %arg1: i32) -> (i32, i32) {
    %c0_i32 = arith.constant 0 : i32
    %c0_i32_0 = arith.constant 0 : i32
    %c0_i32_1 = arith.constant 0 : i32
    return %c0_i32, %c0_i32_0 : i32, i32
  }
  func.func @transform_16(%arg0: i32, %arg1: i32) -> (i32, i32) {
    %c0_i32 = arith.constant 0 : i32
    %c0_i32_0 = arith.constant 0 : i32
    %c0_i32_1 = arith.constant 0 : i32
    return %c0_i32, %c0_i32_0 : i32, i32
  }
  func.func @transform_17(%arg0: i32, %arg1: i32) -> (i32, i32, i32) {
    %c0_i32 = arith.constant 0 : i32
    %c0_i32_0 = arith.constant 0 : i32
    %c0_i32_1 = arith.constant 0 : i32
    return %arg0, %c0_i32, %c0_i32_0 : i32, i32, i32
  }
}

</mosaic_0001>

<llo_original>
// kernel: bert_tagger_forward.1
$region0: #{bert_tagger_forward.1}
  #allocation0 [shape = 'u32[]', space=smem, size = 0x4, offset = 0x4, fixed_abs, tag = 'smem constant byte address 0x4 - core index']
  #allocation1 [shape = 'u32[144,128]{1,0:T(1,128)}', space=vmem, size = 0x12000, scoped, tag = 'internal scratch']
  #allocation2 [shape = 'f32[8,32]{1,0:T(8,128)}', space=vmem, size = 0x1000, scoped, tag = 'scratch operand']
  %s0 = inlined_call_operand.vmem [shape: f32[2,8,32], index: 0, kind: input, shape index: {}]
  %s1 = inlined_call_operand.vmem [shape: f32[1,32], index: 1, kind: input, shape index: {}]
  %s2 = inlined_call_operand.vmem [shape: f32[1,32], index: 2, kind: input, shape index: {}]
  %s3 = inlined_call_operand.vmem [shape: f32[2,32,96], index: 3, kind: input, shape index: {}]
  %s4 = inlined_call_operand.vmem [shape: f32[2,1,96], index: 4, kind: input, shape index: {}]
  %s5 = inlined_call_operand.vmem [shape: f32[2,32,32], index: 5, kind: input, shape index: {}]
  %s6 = inlined_call_operand.vmem [shape: f32[2,1,32], index: 6, kind: input, shape index: {}]
  %s7 = inlined_call_operand.vmem [shape: f32[2,1,32], index: 7, kind: input, shape index: {}]
  %s8 = inlined_call_operand.vmem [shape: f32[2,1,32], index: 8, kind: input, shape index: {}]
  %s9 = inlined_call_operand.vmem [shape: f32[2,32,64], index: 9, kind: input, shape index: {}]
  %s10 = inlined_call_operand.vmem [shape: f32[2,1,64], index: 10, kind: input, shape index: {}]
  %s11 = inlined_call_operand.vmem [shape: f32[2,64,32], index: 11, kind: input, shape index: {}]
  %s12 = inlined_call_operand.vmem [shape: f32[2,1,32], index: 12, kind: input, shape index: {}]
  %s13 = inlined_call_operand.vmem [shape: f32[2,1,32], index: 13, kind: input, shape index: {}]
  %s14 = inlined_call_operand.vmem [shape: f32[2,1,32], index: 14, kind: input, shape index: {}]
  %s15 = inlined_call_operand.vmem [shape: f32[32,128], index: 15, kind: input, shape index: {}]
  %s16 = inlined_call_operand.vmem [shape: f32[1,128], index: 16, kind: input, shape index: {}]
  %s17 = inlined_call_operand.vmem [shape: f32[2,8,128], index: 17, kind: output, shape index: {}]
  %s18 = sld [smem:[#allocation0]]
  $region109: #{bert_tagger_forward.1} parent=0
    _
  %s20 = ssub.s32 1, %s18
  %s21 = scalar_select 0, %s20, %s18
  loop: start=0, step=1, limit=6
  $region2: #{bert_tagger_forward.1} parent=0 // loop_pre_header
    _
  $region3: #{bert_tagger_forward.1} parent=0 // loop_header
    %s23 = sphi 0, %s27
    %p24 = scmp.ge.s32.totalorder %s23, 6
    %s30 = sphi 0, %s42
    %s31 = sphi 0, %s38
    %s32 = sphi 0, %s30
    %s33 = sphi 0, %s31
    %s34 = sphi 0, %s32
    %s35 = sphi 0, %s33
    %s45 = sphi 0, %s47
    %s48 = sphi 0, %s45
    %s49 = sphi 0, %s48
    %s65 = sphi 0, %s49
    %s69 = sphi 0, %s69
    %s71 = sphi 0, %s69
    %s72 = sphi 0, %s71
    %s86 = sphi 0, %s72
    %s90 = sphi 0, %s90
    %s92 = sphi 0, %s90
    %s93 = sphi 0, %s92
    %s107 = sphi 0, %s93
    %s113 = sphi 0, %s115
    %s116 = sphi 0, %s113
    %s117 = sphi 0, %s116
    %s133 = sphi 0, %s117
    %s139 = sphi 0, %s141
    %s142 = sphi 0, %s139
    %s143 = sphi 0, %s142
    %s159 = sphi 0, %s143
    %s165 = sphi 0, %s167
    %s168 = sphi 0, %s165
    %s169 = sphi 0, %s168
    %s185 = sphi 0, %s169
    %s191 = sphi 0, %s193
    %s194 = sphi 0, %s191
    %s195 = sphi 0, %s194
    %s211 = sphi 0, %s195
    %s217 = sphi 0, %s219
    %s220 = sphi 0, %s217
    %s221 = sphi 0, %s220
    %s237 = sphi 0, %s221
    %s243 = sphi 0, %s245
    %s246 = sphi 0, %s243
    %s247 = sphi 0, %s246
    %s263 = sphi 0, %s247
    %s269 = sphi 0, %s271
    %s272 = sphi 0, %s269
    %s273 = sphi 0, %s272
    %s289 = sphi 0, %s273
    %s295 = sphi 0, %s297
    %s298 = sphi 0, %s295
    %s299 = sphi 0, %s298
    %s315 = sphi 0, %s299
    %s321 = sphi 0, %s323
    %s324 = sphi 0, %s321
    %s325 = sphi 0, %s324
    %s341 = sphi 0, %s325
    %s347 = sphi 0, %s349
    %s350 = sphi 0, %s347
    %s351 = sphi 0, %s350
    %s367 = sphi 0, %s351
    %s373 = sphi 0, %s375
    %s376 = sphi 0, %s373
    %s377 = sphi 0, %s376
    %s393 = sphi 0, %s377
    %s399 = sphi 0, %s401
    %s402 = sphi 0, %s399
    %s403 = sphi 0, %s402
    %s419 = sphi 0, %s403
    %s423 = sphi 0, %s423
    %s425 = sphi 0, %s423
    %s426 = sphi 0, %s425
    %s440 = sphi 0, %s426
    %s444 = sphi 0, %s444
    %s446 = sphi 0, %s444
    %s447 = sphi 0, %s446
    %s461 = sphi 0, %s447
    %s467 = sphi 0, %s469
    %s470 = sphi 0, %s467
    %s471 = sphi 0, %s470
    %s487 = sphi 0, %s471
  $region4: #{bert_tagger_forward.1} parent=0 // loop_header_branch
    %26 = sbr.rel (%p24) target = $region8
  $region5: #{bert_tagger_forward.1} parent=0 // loop_body
    %s28 = ssub.s32 %s23, 1
    %s29 = ssub.s32 %s23, 2
    %s36 = sadd.s32 1, %s31
    %p37 = scmp.ge.s32.totalorder %s36, 2
    %s38 = scalar_select %p37, 0, %s36
    %s39 = sadd.s32 1, %s30
    %s40 = scalar_select %p37, %s39, %s30
    %p41 = scmp.ge.s32.totalorder %s40, 2
    %s42 = scalar_select %p41, 0, %s40
    %s43 = ssub.s32 %s30, %s42
    %p44 = scmp.eq.s32.totalorder %s43, 0
    %s46 = sadd.s32 %s45, 1
    %s47 = scalar_select %p44, %s45, %s46
    %p50 = pneg %p44
    %p51 = scmp.eq.s32.totalorder %s23, 3
    %p52 = por %p50, %p51
    %p53 = scmp.ne.s32.totalorder %s45, %s48
    %p54 = scmp.eq.s32.totalorder %s23, 0
    %p55 = por %p53, %p54
    %p56 = scmp.ne.s32.totalorder %s45, %s48
    %p57 = scmp.eq.s32.totalorder %s28, 3
    %p58 = por %p56, %p57
    %p59 = scmp.ne.s32.totalorder %s48, %s49
    %p60 = scmp.eq.s32.totalorder %s28, 0
    %p61 = por %p59, %p60
    %p62 = scmp.ne.s32.totalorder %s48, %s49
    %p63 = scmp.eq.s32.totalorder %s29, 3
    %p64 = por %p62, %p63
    %p66 = scmp.ne.s32.totalorder %s49, %s65
    %p67 = scmp.eq.s32.totalorder %s29, 0
    %p68 = por %p66, %p67
    %s70 = sadd.s32 %s69, 1
    %p73 = scmp.eq.s32.totalorder %s23, 3
    %p74 = scmp.ne.s32.totalorder %s69, %s71
    %p75 = scmp.eq.s32.totalorder %s23, 0
    %p76 = por %p74, %p75
    %p77 = scmp.ne.s32.totalorder %s69, %s71
    %p78 = scmp.eq.s32.totalorder %s28, 3
    %p79 = por %p77, %p78
    %p80 = scmp.ne.s32.totalorder %s71, %s72
    %p81 = scmp.eq.s32.totalorder %s28, 0
    %p82 = por %p80, %p81
    %p83 = scmp.ne.s32.totalorder %s71, %s72
    %p84 = scmp.eq.s32.totalorder %s29, 3
    %p85 = por %p83, %p84
    %p87 = scmp.ne.s32.totalorder %s72, %s86
    %p88 = scmp.eq.s32.totalorder %s29, 0
    %p89 = por %p87, %p88
    %s91 = sadd.s32 %s90, 1
    %p94 = scmp.eq.s32.totalorder %s23, 3
    %p95 = scmp.ne.s32.totalorder %s90, %s92
    %p96 = scmp.eq.s32.totalorder %s23, 0
    %p97 = por %p95, %p96
    %p98 = scmp.ne.s32.totalorder %s90, %s92
    %p99 = scmp.eq.s32.totalorder %s28, 3
    %p100 = por %p98, %p99
    %p101 = scmp.ne.s32.totalorder %s92, %s93
    %p102 = scmp.eq.s32.totalorder %s28, 0
    %p103 = por %p101, %p102
    %p104 = scmp.ne.s32.totalorder %s92, %s93
    %p105 = scmp.eq.s32.totalorder %s29, 3
    %p106 = por %p104, %p105
    %p108 = scmp.ne.s32.totalorder %s93, %s107
    %p109 = scmp.eq.s32.totalorder %s29, 0
    %p110 = por %p108, %p109
    %s111 = ssub.s32 %s31, %s38
    %p112 = scmp.eq.s32.totalorder %s111, 0
    %s114 = sadd.s32 %s113, 1
    %s115 = scalar_select %p112, %s113, %s114
    %p118 = pneg %p112
    %p119 = scmp.eq.s32.totalorder %s23, 3
    %p120 = por %p118, %p119
    %p121 = scmp.ne.s32.totalorder %s113, %s116
    %p122 = scmp.eq.s32.totalorder %s23, 0
    %p123 = por %p121, %p122
    %p124 = scmp.ne.s32.totalorder %s113, %s116
    %p125 = scmp.eq.s32.totalorder %s28, 3
    %p126 = por %p124, %p125
    %p127 = scmp.ne.s32.totalorder %s116, %s117
    %p128 = scmp.eq.s32.totalorder %s28, 0
    %p129 = por %p127, %p128
    %p130 = scmp.ne.s32.totalorder %s116, %s117
    %p131 = scmp.eq.s32.totalorder %s29, 3
    %p132 = por %p130, %p131
    %p134 = scmp.ne.s32.totalorder %s117, %s133
    %p135 = scmp.eq.s32.totalorder %s29, 0
    %p136 = por %p134, %p135
    %s137 = ssub.s32 %s31, %s38
    %p138 = scmp.eq.s32.totalorder %s137, 0
    %s140 = sadd.s32 %s139, 1
    %s141 = scalar_select %p138, %s139, %s140
    %p144 = pneg %p138
    %p145 = scmp.eq.s32.totalorder %s23, 3
    %p146 = por %p144, %p145
    %p147 = scmp.ne.s32.totalorder %s139, %s142
    %p148 = scmp.eq.s32.totalorder %s23, 0
    %p149 = por %p147, %p148
    %p150 = scmp.ne.s32.totalorder %s139, %s142
    %p151 = scmp.eq.s32.totalorder %s28, 3
    %p152 = por %p150, %p151
    %p153 = scmp.ne.s32.totalorder %s142, %s143
    %p154 = scmp.eq.s32.totalorder %s28, 0
    %p155 = por %p153, %p154
    %p156 = scmp.ne.s32.totalorder %s142, %s143
    %p157 = scmp.eq.s32.totalorder %s29, 3
    %p158 = por %p156, %p157
    %p160 = scmp.ne.s32.totalorder %s143, %s159
    %p161 = scmp.eq.s32.totalorder %s29, 0
    %p162 = por %p160, %p161
    %s163 = ssub.s32 %s31, %s38
    %p164 = scmp.eq.s32.totalorder %s163, 0
    %s166 = sadd.s32 %s165, 1
    %s167 = scalar_select %p164, %s165, %s166
    %p170 = pneg %p164
    %p171 = scmp.eq.s32.totalorder %s23, 3
    %p172 = por %p170, %p171
    %p173 = scmp.ne.s32.totalorder %s165, %s168
    %p174 = scmp.eq.s32.totalorder %s23, 0
    %p175 = por %p173, %p174
    %p176 = scmp.ne.s32.totalorder %s165, %s168
    %p177 = scmp.eq.s32.totalorder %s28, 3
    %p178 = por %p176, %p177
    %p179 = scmp.ne.s32.totalorder %s168, %s169
    %p180 = scmp.eq.s32.totalorder %s28, 0
    %p181 = por %p179, %p180
    %p182 = scmp.ne.s32.totalorder %s168, %s169
    %p183 = scmp.eq.s32.totalorder %s29, 3
    %p184 = por %p182, %p183
    %p186 = scmp.ne.s32.totalorder %s169, %s185
    %p187 = scmp.eq.s32.totalorder %s29, 0
    %p188 = por %p186, %p187
    %s189 = ssub.s32 %s31, %s38
    %p190 = scmp.eq.s32.totalorder %s189, 0
    %s192 = sadd.s32 %s191, 1
    %s193 = scalar_select %p190, %s191, %s192
    %p196 = pneg %p190
    %p197 = scmp.eq.s32.totalorder %s23, 3
    %p198 = por %p196, %p197
    %p199 = scmp.ne.s32.totalorder %s191, %s194
    %p200 = scmp.eq.s32.totalorder %s23, 0
    %p201 = por %p199, %p200
    %p202 = scmp.ne.s32.totalorder %s191, %s194
    %p203 = scmp.eq.s32.totalorder %s28, 3
    %p204 = por %p202, %p203
    %p205 = scmp.ne.s32.totalorder %s194, %s195
    %p206 = scmp.eq.s32.totalorder %s28, 0
    %p207 = por %p205, %p206
    %p208 = scmp.ne.s32.totalorder %s194, %s195
    %p209 = scmp.eq.s32.totalorder %s29, 3
    %p210 = por %p208, %p209
    %p212 = scmp.ne.s32.totalorder %s195, %s211
    %p213 = scmp.eq.s32.totalorder %s29, 0
    %p214 = por %p212, %p213
    %s215 = ssub.s32 %s31, %s38
    %p216 = scmp.eq.s32.totalorder %s215, 0
    %s218 = sadd.s32 %s217, 1
    %s219 = scalar_select %p216, %s217, %s218
    %p222 = pneg %p216
    %p223 = scmp.eq.s32.totalorder %s23, 3
    %p224 = por %p222, %p223
    %p225 = scmp.ne.s32.totalorder %s217, %s220
    %p226 = scmp.eq.s32.totalorder %s23, 0
    %p227 = por %p225, %p226
    %p228 = scmp.ne.s32.totalorder %s217, %s220
    %p229 = scmp.eq.s32.totalorder %s28, 3
    %p230 = por %p228, %p229
    %p231 = scmp.ne.s32.totalorder %s220, %s221
    %p232 = scmp.eq.s32.totalorder %s28, 0
    %p233 = por %p231, %p232
    %p234 = scmp.ne.s32.totalorder %s220, %s221
    %p235 = scmp.eq.s32.totalorder %s29, 3
    %p236 = por %p234, %p235
    %p238 = scmp.ne.s32.totalorder %s221, %s237
    %p239 = scmp.eq.s32.totalorder %s29, 0
    %p240 = por %p238, %p239
    %s241 = ssub.s32 %s31, %s38
    %p242 = scmp.eq.s32.totalorder %s241, 0
    %s244 = sadd.s32 %s243, 1
    %s245 = scalar_select %p242, %s243, %s244
    %p248 = pneg %p242
    %p249 = scmp.eq.s32.totalorder %s23, 3
    %p250 = por %p248, %p249
    %p251 = scmp.ne.s32.totalorder %s243, %s246
    %p252 = scmp.eq.s32.totalorder %s23, 0
    %p253 = por %p251, %p252
    %p254 = scmp.ne.s32.totalorder %s243, %s246
    %p255 = scmp.eq.s32.totalorder %s28, 3
    %p256 = por %p254, %p255
    %p257 = scmp.ne.s32.totalorder %s246, %s247
    %p258 = scmp.eq.s32.totalorder %s28, 0
    %p259 = por %p257, %p258
    %p260 = scmp.ne.s32.totalorder %s246, %s247
    %p261 = scmp.eq.s32.totalorder %s29, 3
    %p262 = por %p260, %p261
    %p264 = scmp.ne.s32.totalorder %s247, %s263
    %p265 = scmp.eq.s32.totalorder %s29, 0
    %p266 = por %p264, %p265
    %s267 = ssub.s32 %s31, %s38
    %p268 = scmp.eq.s32.totalorder %s267, 0
    %s270 = sadd.s32 %s269, 1
    %s271 = scalar_select %p268, %s269, %s270
    %p274 = pneg %p268
    %p275 = scmp.eq.s32.totalorder %s23, 3
    %p276 = por %p274, %p275
    %p277 = scmp.ne.s32.totalorder %s269, %s272
    %p278 = scmp.eq.s32.totalorder %s23, 0
    %p279 = por %p277, %p278
    %p280 = scmp.ne.s32.totalorder %s269, %s272
    %p281 = scmp.eq.s32.totalorder %s28, 3
    %p282 = por %p280, %p281
    %p283 = scmp.ne.s32.totalorder %s272, %s273
    %p284 = scmp.eq.s32.totalorder %s28, 0
    %p285 = por %p283, %p284
    %p286 = scmp.ne.s32.totalorder %s272, %s273
    %p287 = scmp.eq.s32.totalorder %s29, 3
    %p288 = por %p286, %p287
    %p290 = scmp.ne.s32.totalorder %s273, %s289
    %p291 = scmp.eq.s32.totalorder %s29, 0
    %p292 = por %p290, %p291
    %s293 = ssub.s32 %s31, %s38
    %p294 = scmp.eq.s32.totalorder %s293, 0
    %s296 = sadd.s32 %s295, 1
    %s297 = scalar_select %p294, %s295, %s296
    %p300 = pneg %p294
    %p301 = scmp.eq.s32.totalorder %s23, 3
    %p302 = por %p300, %p301
    %p303 = scmp.ne.s32.totalorder %s295, %s298
    %p304 = scmp.eq.s32.totalorder %s23, 0
    %p305 = por %p303, %p304
    %p306 = scmp.ne.s32.totalorder %s295, %s298
    %p307 = scmp.eq.s32.totalorder %s28, 3
    %p308 = por %p306, %p307
    %p309 = scmp.ne.s32.totalorder %s298, %s299
    %p310 = scmp.eq.s32.totalorder %s28, 0
    %p311 = por %p309, %p310
    %p312 = scmp.ne.s32.totalorder %s298, %s299
    %p313 = scmp.eq.s32.totalorder %s29, 3
    %p314 = por %p312, %p313
    %p316 = scmp.ne.s32.totalorder %s299, %s315
    %p317 = scmp.eq.s32.totalorder %s29, 0
    %p318 = por %p316, %p317
    %s319 = ssub.s32 %s31, %s38
    %p320 = scmp.eq.s32.totalorder %s319, 0
    %s322 = sadd.s32 %s321, 1
    %s323 = scalar_select %p320, %s321, %s322
    %p326 = pneg %p320
    %p327 = scmp.eq.s32.totalorder %s23, 3
    %p328 = por %p326, %p327
    %p329 = scmp.ne.s32.totalorder %s321, %s324
    %p330 = scmp.eq.s32.totalorder %s23, 0
    %p331 = por %p329, %p330
    %p332 = scmp.ne.s32.totalorder %s321, %s324
    %p333 = scmp.eq.s32.totalorder %s28, 3
    %p334 = por %p332, %p333
    %p335 = scmp.ne.s32.totalorder %s324, %s325
    %p336 = scmp.eq.s32.totalorder %s28, 0
    %p337 = por %p335, %p336
    %p338 = scmp.ne.s32.totalorder %s324, %s325
    %p339 = scmp.eq.s32.totalorder %s29, 3
    %p340 = por %p338, %p339
    %p342 = scmp.ne.s32.totalorder %s325, %s341
    %p343 = scmp.eq.s32.totalorder %s29, 0
    %p344 = por %p342, %p343
    %s345 = ssub.s32 %s31, %s38
    %p346 = scmp.eq.s32.totalorder %s345, 0
    %s348 = sadd.s32 %s347, 1
    %s349 = scalar_select %p346, %s347, %s348
    %p352 = pneg %p346
    %p353 = scmp.eq.s32.totalorder %s23, 3
    %p354 = por %p352, %p353
    %p355 = scmp.ne.s32.totalorder %s347, %s350
    %p356 = scmp.eq.s32.totalorder %s23, 0
    %p357 = por %p355, %p356
    %p358 = scmp.ne.s32.totalorder %s347, %s350
    %p359 = scmp.eq.s32.totalorder %s28, 3
    %p360 = por %p358, %p359
    %p361 = scmp.ne.s32.totalorder %s350, %s351
    %p362 = scmp.eq.s32.totalorder %s28, 0
    %p363 = por %p361, %p362
    %p364 = scmp.ne.s32.totalorder %s350, %s351
    %p365 = scmp.eq.s32.totalorder %s29, 3
    %p366 = por %p364, %p365
    %p368 = scmp.ne.s32.totalorder %s351, %s367
    %p369 = scmp.eq.s32.totalorder %s29, 0
    %p370 = por %p368, %p369
    %s371 = ssub.s32 %s31, %s38
    %p372 = scmp.eq.s32.totalorder %s371, 0
    %s374 = sadd.s32 %s373, 1
    %s375 = scalar_select %p372, %s373, %s374
    %p378 = pneg %p372
    %p379 = scmp.eq.s32.totalorder %s23, 3
    %p380 = por %p378, %p379
    %p381 = scmp.ne.s32.totalorder %s373, %s376
    %p382 = scmp.eq.s32.totalorder %s23, 0
    %p383 = por %p381, %p382
    %p384 = scmp.ne.s32.totalorder %s373, %s376
    %p385 = scmp.eq.s32.totalorder %s28, 3
    %p386 = por %p384, %p385
    %p387 = scmp.ne.s32.totalorder %s376, %s377
    %p388 = scmp.eq.s32.totalorder %s28, 0
    %p389 = por %p387, %p388
    %p390 = scmp.ne.s32.totalorder %s376, %s377
    %p391 = scmp.eq.s32.totalorder %s29, 3
    %p392 = por %p390, %p391
    %p394 = scmp.ne.s32.totalorder %s377, %s393
    %p395 = scmp.eq.s32.totalorder %s29, 0
    %p396 = por %p394, %p395
    %s397 = ssub.s32 %s31, %s38
    %p398 = scmp.eq.s32.totalorder %s397, 0
    %s400 = sadd.s32 %s399, 1
    %s401 = scalar_select %p398, %s399, %s400
    %p404 = pneg %p398
    %p405 = scmp.eq.s32.totalorder %s23, 3
    %p406 = por %p404, %p405
    %p407 = scmp.ne.s32.totalorder %s399, %s402
    %p408 = scmp.eq.s32.totalorder %s23, 0
    %p409 = por %p407, %p408
    %p410 = scmp.ne.s32.totalorder %s399, %s402
    %p411 = scmp.eq.s32.totalorder %s28, 3
    %p412 = por %p410, %p411
    %p413 = scmp.ne.s32.totalorder %s402, %s403
    %p414 = scmp.eq.s32.totalorder %s28, 0
    %p415 = por %p413, %p414
    %p416 = scmp.ne.s32.totalorder %s402, %s403
    %p417 = scmp.eq.s32.totalorder %s29, 3
    %p418 = por %p416, %p417
    %p420 = scmp.ne.s32.totalorder %s403, %s419
    %p421 = scmp.eq.s32.totalorder %s29, 0
    %p422 = por %p420, %p421
    %s424 = sadd.s32 %s423, 1
    %p427 = scmp.eq.s32.totalorder %s23, 3
    %p428 = scmp.ne.s32.totalorder %s423, %s425
    %p429 = scmp.eq.s32.totalorder %s23, 0
    %p430 = por %p428, %p429
    %p431 = scmp.ne.s32.totalorder %s423, %s425
    %p432 = scmp.eq.s32.totalorder %s28, 3
    %p433 = por %p431, %p432
    %p434 = scmp.ne.s32.totalorder %s425, %s426
    %p435 = scmp.eq.s32.totalorder %s28, 0
    %p436 = por %p434, %p435
    %p437 = scmp.ne.s32.totalorder %s425, %s426
    %p438 = scmp.eq.s32.totalorder %s29, 3
    %p439 = por %p437, %p438
    %p441 = scmp.ne.s32.totalorder %s426, %s440
    %p442 = scmp.eq.s32.totalorder %s29, 0
    %p443 = por %p441, %p442
    %s445 = sadd.s32 %s444, 1
    %p448 = scmp.eq.s32.totalorder %s23, 3
    %p449 = scmp.ne.s32.totalorder %s444, %s446
    %p450 = scmp.eq.s32.totalorder %s23, 0
    %p451 = por %p449, %p450
    %p452 = scmp.ne.s32.totalorder %s444, %s446
    %p453 = scmp.eq.s32.totalorder %s28, 3
    %p454 = por %p452, %p453
    %p455 = scmp.ne.s32.totalorder %s446, %s447
    %p456 = scmp.eq.s32.totalorder %s28, 0
    %p457 = por %p455, %p456
    %p458 = scmp.ne.s32.totalorder %s446, %s447
    %p459 = scmp.eq.s32.totalorder %s29, 3
    %p460 = por %p458, %p459
    %p462 = scmp.ne.s32.totalorder %s447, %s461
    %p463 = scmp.eq.s32.totalorder %s29, 0
    %p464 = por %p462, %p463
    %s465 = ssub.s32 %s30, %s42
    %p466 = scmp.eq.s32.totalorder %s465, 0
    %s468 = sadd.s32 %s467, 1
    %s469 = scalar_select %p466, %s467, %s468
    %p472 = pneg %p466
    %p473 = scmp.eq.s32.totalorder %s23, 3
    %p474 = por %p472, %p473
    %p475 = scmp.ne.s32.totalorder %s467, %s470
    %p476 = scmp.eq.s32.totalorder %s23, 0
    %p477 = por %p475, %p476
    %p478 = scmp.ne.s32.totalorder %s467, %s470
    %p479 = scmp.eq.s32.totalorder %s28, 3
    %p480 = por %p478, %p479
    %p481 = scmp.ne.s32.totalorder %s470, %s471
    %p482 = scmp.eq.s32.totalorder %s28, 0
    %p483 = por %p481, %p482
    %p484 = scmp.ne.s32.totalorder %s470, %s471
    %p485 = scmp.eq.s32.totalorder %s29, 3
    %p486 = por %p484, %p485
    %p488 = scmp.ne.s32.totalorder %s471, %s487
    %p489 = scmp.eq.s32.totalorder %s29, 0
    %p490 = por %p488, %p489
    %p491 = scmp.le.s32.totalorder 1, %s23
    %p492 = scmp.lt.s32.totalorder %s23, 5
    %p493 = pnand %p491, %p492
    %p494 = pneg %p493
    // Predicated region
    $region9: #{bert_tagger_forward.1} parent=5 // pred_check
      _
    $region10: #{bert_tagger_forward.1} parent=5 // pred_check_branch
      %496 = sbr.rel (%p493) target = $region12
    $region11: #{bert_tagger_forward.1} parent=5 // pred_region
      %s497 = ssub.s32 %s23, 1
      // Predicated region
      $region13: #{bert_tagger_forward.1} parent=11 // pred_check
        %p498 = pneg %p82
      $region14: #{bert_tagger_forward.1} parent=11 // pred_check_branch
        %500 = sbr.rel (%p498) target = $region16
      $region15: #{bert_tagger_forward.1} parent=11 // pred_region
        _
      $region16: #{bert_tagger_forward.1} parent=11 // pred_fallthru
        _
      // Predicated region
      $region17: #{bert_tagger_forward.1} parent=11 // pred_check
        %p501 = pneg %p103
      $region18: #{bert_tagger_forward.1} parent=11 // pred_check_branch
        %503 = sbr.rel (%p501) target = $region20
      $region19: #{bert_tagger_forward.1} parent=11 // pred_region
        _
      $region20: #{bert_tagger_forward.1} parent=11 // pred_fallthru
        _
      // Predicated region
      $region21: #{bert_tagger_forward.1} parent=11 // pred_check
        %p504 = pneg %p436
      $region22: #{bert_tagger_forward.1} parent=11 // pred_check_branch
        %506 = sbr.rel (%p504) target = $region24
      $region23: #{bert_tagger_forward.1} parent=11 // pred_region
        _
      $region24: #{bert_tagger_forward.1} parent=11 // pred_fallthru
        _
      // Predicated region
      $region25: #{bert_tagger_forward.1} parent=11 // pred_check
        %p507 = pneg %p457
      $region26: #{bert_tagger_forward.1} parent=11 // pred_check_branch
        %509 = sbr.rel (%p507) target = $region28
      $region27: #{bert_tagger_forward.1} parent=11 // pred_region
        _
      $region28: #{bert_tagger_forward.1} parent=11 // pred_fallthru
        _
    $region12: #{bert_tagger_forward.1} parent=5 // pred_fallthru
      _
    %p510 = scmp.lt.s32.totalorder %s23, 4
    // Predicated region
    $region29: #{bert_tagger_forward.1} parent=5 // pred_check
      %p511 = pneg %p510
    $region30: #{bert_tagger_forward.1} parent=5 // pred_check_branch
      %513 = sbr.rel (%p511) target = $region32
    $region31: #{bert_tagger_forward.1} parent=5 // pred_region
      // Predicated region
      $region33: #{bert_tagger_forward.1} parent=31 // pred_check
        %p514 = pneg %p55
      $region34: #{bert_tagger_forward.1} parent=31 // pred_check_branch
        %516 = sbr.rel (%p514) target = $region36
      $region35: #{bert_tagger_forward.1} parent=31 // pred_region
        %p517 = scmp.lt.s32.totalorder %s30, 1
        %s518 = scalar_select %p517, %s30, 1
        %s519 = smul.addr %s518, 8
        %s520 = scalar_lea.vmem %s0, %s519
      $region36: #{bert_tagger_forward.1} parent=31 // pred_fallthru
        _
      // Predicated region
      $region37: #{bert_tagger_forward.1} parent=31 // pred_check
        %p521 = pneg %p123
      $region38: #{bert_tagger_forward.1} parent=31 // pred_check_branch
        %523 = sbr.rel (%p521) target = $region40
      $region39: #{bert_tagger_forward.1} parent=31 // pred_region
        %p524 = scmp.lt.s32.totalorder %s31, 1
        %s525 = scalar_select %p524, %s31, 1
        %s526 = smul.addr %s525, 4
        %s527 = smul.addr %s526, 8
        %s528 = scalar_lea.vmem %s3, %s527
      $region40: #{bert_tagger_forward.1} parent=31 // pred_fallthru
        _
      // Predicated region
      $region41: #{bert_tagger_forward.1} parent=31 // pred_check
        %p529 = pneg %p149
      $region42: #{bert_tagger_forward.1} parent=31 // pred_check_branch
        %531 = sbr.rel (%p529) target = $region44
      $region43: #{bert_tagger_forward.1} parent=31 // pred_region
        %p532 = scmp.lt.s32.totalorder %s31, 1
        %s533 = scalar_select %p532, %s31, 1
        %s534 = scalar_lea.vmem %s4, %s533
      $region44: #{bert_tagger_forward.1} parent=31 // pred_fallthru
        _
      // Predicated region
      $region45: #{bert_tagger_forward.1} parent=31 // pred_check
        %p535 = pneg %p175
      $region46: #{bert_tagger_forward.1} parent=31 // pred_check_branch
        %537 = sbr.rel (%p535) target = $region48
      $region47: #{bert_tagger_forward.1} parent=31 // pred_region
        %p538 = scmp.lt.s32.totalorder %s31, 1
        %s539 = scalar_select %p538, %s31, 1
        %s540 = smul.addr %s539, 4
        %s541 = smul.addr %s540, 8
        %s542 = scalar_lea.vmem %s5, %s541
      $region48: #{bert_tagger_forward.1} parent=31 // pred_fallthru
        _
      // Predicated region
      $region49: #{bert_tagger_forward.1} parent=31 // pred_check
        %p543 = pneg %p201
      $region50: #{bert_tagger_forward.1} parent=31 // pred_check_branch
        %545 = sbr.rel (%p543) target = $region52
      $region51: #{bert_tagger_forward.1} parent=31 // pred_region
        %p546 = scmp.lt.s32.totalorder %s31, 1
        %s547 = scalar_select %p546, %s31, 1
        %s548 = scalar_lea.vmem %s6, %s547
      $region52: #{bert_tagger_forward.1} parent=31 // pred_fallthru
        _
      // Predicated region
      $region53: #{bert_tagger_forward.1} parent=31 // pred_check
        %p549 = pneg %p227
      $region54: #{bert_tagger_forward.1} parent=31 // pred_check_branch
        %551 = sbr.rel (%p549) target = $region56
      $region55: #{bert_tagger_forward.1} parent=31 // pred_region
        %p552 = scmp.lt.s32.totalorder %s31, 1
        %s553 = scalar_select %p552, %s31, 1
        %s554 = scalar_lea.vmem %s7, %s553
      $region56: #{bert_tagger_forward.1} parent=31 // pred_fallthru
        _
      // Predicated region
      $region57: #{bert_tagger_forward.1} parent=31 // pred_check
        %p555 = pneg %p253
      $region58: #{bert_tagger_forward.1} parent=31 // pred_check_branch
        %557 = sbr.rel (%p555) target = $region60
      $region59: #{bert_tagger_forward.1} parent=31 // pred_region
        %p558 = scmp.lt.s32.totalorder %s31, 1
        %s559 = scalar_select %p558, %s31, 1
        %s560 = scalar_lea.vmem %s8, %s559
      $region60: #{bert_tagger_forward.1} parent=31 // pred_fallthru
        _
      // Predicated region
      $region61: #{bert_tagger_forward.1} parent=31 // pred_check
        %p561 = pneg %p279
      $region62: #{bert_tagger_forward.1} parent=31 // pred_check_branch
        %563 = sbr.rel (%p561) target = $region64
      $region63: #{bert_tagger_forward.1} parent=31 // pred_region
        %p564 = scmp.lt.s32.totalorder %s31, 1
        %s565 = scalar_select %p564, %s31, 1
        %s566 = smul.addr %s565, 4
        %s567 = smul.addr %s566, 8
        %s568 = scalar_lea.vmem %s9, %s567
      $region64: #{bert_tagger_forward.1} parent=31 // pred_fallthru
        _
      // Predicated region
      $region65: #{bert_tagger_forward.1} parent=31 // pred_check
        %p569 = pneg %p305
      $region66: #{bert_tagger_forward.1} parent=31 // pred_check_branch
        %571 = sbr.rel (%p569) target = $region68
      $region67: #{bert_tagger_forward.1} parent=31 // pred_region
        %p572 = scmp.lt.s32.totalorder %s31, 1
        %s573 = scalar_select %p572, %s31, 1
        %s574 = scalar_lea.vmem %s10, %s573
      $region68: #{bert_tagger_forward.1} parent=31 // pred_fallthru
        _
      // Predicated region
      $region69: #{bert_tagger_forward.1} parent=31 // pred_check
        %p575 = pneg %p331
      $region70: #{bert_tagger_forward.1} parent=31 // pred_check_branch
        %577 = sbr.rel (%p575) target = $region72
      $region71: #{bert_tagger_forward.1} parent=31 // pred_region
        %p578 = scmp.lt.s32.totalorder %s31, 1
        %s579 = scalar_select %p578, %s31, 1
        %s580 = smul.addr %s579, 8
        %s581 = smul.addr %s580, 8
        %s582 = scalar_lea.vmem %s11, %s581
      $region72: #{bert_tagger_forward.1} parent=31 // pred_fallthru
        _
      // Predicated region
      $region73: #{bert_tagger_forward.1} parent=31 // pred_check
        %p583 = pneg %p357
      $region74: #{bert_tagger_forward.1} parent=31 // pred_check_branch
        %585 = sbr.rel (%p583) target = $region76
      $region75: #{bert_tagger_forward.1} parent=31 // pred_region
        %p586 = scmp.lt.s32.totalorder %s31, 1
        %s587 = scalar_select %p586, %s31, 1
        %s588 = scalar_lea.vmem %s12, %s587
      $region76: #{bert_tagger_forward.1} parent=31 // pred_fallthru
        _
      // Predicated region
      $region77: #{bert_tagger_forward.1} parent=31 // pred_check
        %p589 = pneg %p383
      $region78: #{bert_tagger_forward.1} parent=31 // pred_check_branch
        %591 = sbr.rel (%p589) target = $region80
      $region79: #{bert_tagger_forward.1} parent=31 // pred_region
        %p592 = scmp.lt.s32.totalorder %s31, 1
        %s593 = scalar_select %p592, %s31, 1
        %s594 = scalar_lea.vmem %s13, %s593
      $region80: #{bert_tagger_forward.1} parent=31 // pred_fallthru
        _
      // Predicated region
      $region81: #{bert_tagger_forward.1} parent=31 // pred_check
        %p595 = pneg %p409
      $region82: #{bert_tagger_forward.1} parent=31 // pred_check_branch
        %597 = sbr.rel (%p595) target = $region84
      $region83: #{bert_tagger_forward.1} parent=31 // pred_region
        %p598 = scmp.lt.s32.totalorder %s31, 1
        %s599 = scalar_select %p598, %s31, 1
        %s600 = scalar_lea.vmem %s14, %s599
      $region84: #{bert_tagger_forward.1} parent=31 // pred_fallthru
        _
    $region32: #{bert_tagger_forward.1} parent=5 // pred_fallthru
      _
    %p601 = scmp.le.s32.totalorder 1, %s23
    %p602 = scmp.lt.s32.totalorder %s23, 5
    %p603 = pnand %p601, %p602
    %p604 = pneg %p603
    // Predicated region
    $region85: #{bert_tagger_forward.1} parent=5 // pred_check
      _
    $region86: #{bert_tagger_forward.1} parent=5 // pred_check_branch
      %606 = sbr.rel (%p603) target = $region88
    $region87: #{bert_tagger_forward.1} parent=5 // pred_region
      %s607 = ssub.s32 %s23, 1
      %p608 = scmp.lt.s32.totalorder %s32, 1
      %s609 = scalar_select %p608, %s32, 1
      %s610 = smul.addr %s609, 8
      %s611 = scalar_lea.vmem %s0, %s610
      %p612 = pneg %p61
      %p613 = pneg %p58
      %p614 = pneg %p82
      %p615 = pneg %p79
      %p616 = pneg %p103
      %p617 = pneg %p100
      %p618 = scmp.lt.s32.totalorder %s33, 1
      %s619 = scalar_select %p618, %s33, 1
      %s620 = smul.addr %s619, 4
      %s621 = smul.addr %s620, 8
      %s622 = scalar_lea.vmem %s3, %s621
      %p623 = pneg %p129
      %p624 = pneg %p126
      %p625 = scmp.lt.s32.totalorder %s33, 1
      %s626 = scalar_select %p625, %s33, 1
      %s627 = scalar_lea.vmem %s4, %s626
      %p628 = pneg %p155
      %p629 = pneg %p152
      %p630 = scmp.lt.s32.totalorder %s33, 1
      %s631 = scalar_select %p630, %s33, 1
      %s632 = smul.addr %s631, 4
      %s633 = smul.addr %s632, 8
      %s634 = scalar_lea.vmem %s5, %s633
      %p635 = pneg %p181
      %p636 = pneg %p178
      %p637 = scmp.lt.s32.totalorder %s33, 1
      %s638 = scalar_select %p637, %s33, 1
      %s639 = scalar_lea.vmem %s6, %s638
      %p640 = pneg %p207
      %p641 = pneg %p204
      %p642 = scmp.lt.s32.totalorder %s33, 1
      %s643 = scalar_select %p642, %s33, 1
      %s644 = scalar_lea.vmem %s7, %s643
      %p645 = pneg %p233
      %p646 = pneg %p230
      %p647 = scmp.lt.s32.totalorder %s33, 1
      %s648 = scalar_select %p647, %s33, 1
      %s649 = scalar_lea.vmem %s8, %s648
      %p650 = pneg %p259
      %p651 = pneg %p256
      %p652 = scmp.lt.s32.totalorder %s33, 1
      %s653 = scalar_select %p652, %s33, 1
      %s654 = smul.addr %s653, 4
      %s655 = smul.addr %s654, 8
      %s656 = scalar_lea.vmem %s9, %s655
      %p657 = pneg %p285
      %p658 = pneg %p282
      %p659 = scmp.lt.s32.totalorder %s33, 1
      %s660 = scalar_select %p659, %s33, 1
      %s661 = scalar_lea.vmem %s10, %s660
      %p662 = pneg %p311
      %p663 = pneg %p308
      %p664 = scmp.lt.s32.totalorder %s33, 1
      %s665 = scalar_select %p664, %s33, 1
      %s666 = smul.addr %s665, 8
      %s667 = smul.addr %s666, 8
      %s668 = scalar_lea.vmem %s11, %s667
      %p669 = pneg %p337
      %p670 = pneg %p334
      %p671 = scmp.lt.s32.totalorder %s33, 1
      %s672 = scalar_select %p671, %s33, 1
      %s673 = scalar_lea.vmem %s12, %s672
      %p674 = pneg %p363
      %p675 = pneg %p360
      %p676 = scmp.lt.s32.totalorder %s33, 1
      %s677 = scalar_select %p676, %s33, 1
      %s678 = scalar_lea.vmem %s13, %s677
      %p679 = pneg %p389
      %p680 = pneg %p386
      %p681 = scmp.lt.s32.totalorder %s33, 1
      %s682 = scalar_select %p681, %s33, 1
      %s683 = scalar_lea.vmem %s14, %s682
      %p684 = pneg %p415
      %p685 = pneg %p412
      %p686 = pneg %p436
      %p687 = pneg %p433
      %p688 = pneg %p457
      %p689 = pneg %p454
      %p690 = pneg %p483
      %p691 = pneg %p480
      %p692 = scmp.lt.s32.totalorder %s32, 1
      %s693 = scalar_select %p692, %s32, 1
      %s694 = smul.addr %s693, 8
      %s695 = scalar_lea.vmem %s17, %s694
      %p696 = scmp.lt.s32.totalorder %s32, 1
      %s697 = scalar_select %p696, %s32, 1
      %s698 = smul.addr %s697, 8
      %s699 = scalar_lea.vmem %s0, %s698
      %p700 = scmp.lt.s32.totalorder %s33, 1
      %s701 = scalar_select %p700, %s33, 1
      %s702 = smul.addr %s701, 4
      %s703 = smul.addr %s702, 8
      %s704 = scalar_lea.vmem %s3, %s703
      %p705 = scmp.lt.s32.totalorder %s33, 1
      %s706 = scalar_select %p705, %s33, 1
      %s707 = scalar_lea.vmem %s4, %s706
      %p708 = scmp.lt.s32.totalorder %s33, 1
      %s709 = scalar_select %p708, %s33, 1
      %s710 = smul.addr %s709, 4
      %s711 = smul.addr %s710, 8
      %s712 = scalar_lea.vmem %s5, %s711
      %p713 = scmp.lt.s32.totalorder %s33, 1
      %s714 = scalar_select %p713, %s33, 1
      %s715 = scalar_lea.vmem %s6, %s714
      %p716 = scmp.lt.s32.totalorder %s33, 1
      %s717 = scalar_select %p716, %s33, 1
      %s718 = scalar_lea.vmem %s7, %s717
      %p719 = scmp.lt.s32.totalorder %s33, 1
      %s720 = scalar_select %p719, %s33, 1
      %s721 = scalar_lea.vmem %s8, %s720
      %p722 = scmp.lt.s32.totalorder %s33, 1
      %s723 = scalar_select %p722, %s33, 1
      %s724 = smul.addr %s723, 4
      %s725 = smul.addr %s724, 8
      %s726 = scalar_lea.vmem %s9, %s725
      %p727 = scmp.lt.s32.totalorder %s33, 1
      %s728 = scalar_select %p727, %s33, 1
      %s729 = scalar_lea.vmem %s10, %s728
      %p730 = scmp.lt.s32.totalorder %s33, 1
      %s731 = scalar_select %p730, %s33, 1
      %s732 = smul.addr %s731, 8
      %s733 = smul.addr %s732, 8
      %s734 = scalar_lea.vmem %s11, %s733
      %p735 = scmp.lt.s32.totalorder %s33, 1
      %s736 = scalar_select %p735, %s33, 1
      %s737 = scalar_lea.vmem %s12, %s736
      %p738 = scmp.lt.s32.totalorder %s33, 1
      %s739 = scalar_select %p738, %s33, 1
      %s740 = scalar_lea.vmem %s13, %s739
      %p741 = scmp.lt.s32.totalorder %s33, 1
      %s742 = scalar_select %p741, %s33, 1
      %s743 = scalar_lea.vmem %s14, %s742
      %p744 = scmp.lt.s32.totalorder %s32, 1
      %s745 = scalar_select %p744, %s32, 1
      %s746 = smul.addr %s745, 8
      %s747 = scalar_lea.vmem %s17, %s746
      %p748 = scmp.eq.s32.totalorder %s33, 0
      // Predicated region
      $region89: #{bert_tagger_forward.1} parent=87 // pred_check
        %p749 = pneg %p748
      $region90: #{bert_tagger_forward.1} parent=87 // pred_check_branch
        %751 = sbr.rel (%p749) target = $region92
      $region91: #{bert_tagger_forward.1} parent=87 // pred_region
        %v752 = vld [vmem:[%s699] sm:$0xff]
        %v753 = vld [vmem:[%s1] sm:$0x1]
        %v754 = vld [vmem:[%s2] sm:$0x1]
        %vm755 = vcmask 261120
        %v756 = vsel %vm755, %v752, 0.0
        %757 = vadd.xlane.f32.xlu0 %v756
        %v758 = vpop.xlane.xlu0 %757
        %v759 = vrcp.pop 32.0
        %v760 = vmul.f32 %v758, %v759
        %v761 = vsub.f32 %v752, %v760
        %v762 = vmul.f32 %v761, %v761
        %v763 = vsel %vm755, %v762, 0.0
        %764 = vadd.xlane.f32.xlu0 %v763
        %v765 = vpop.xlane.xlu0 %764
        %v766 = vmul.f32 %v765, %v759
        %v767 = vadd.f32 %v766, 1e-12
        %v768 = vrsqrt.pop %v767
        %v769 = vmul.f32 %v761, %v768
        %v771 = vlaneseq
        %v772 = vshrl.u32 %v771, 7
        %v773 = vsub.s32 0, %v772
        %v774 = vrot.slane %v753, %v773
        %v776 = vmul.f32 %v769, %v774
        %v778 = vlaneseq
        %v779 = vshrl.u32 %v778, 7
        %v780 = vsub.s32 0, %v779
        %v781 = vrot.slane %v754, %v780
        %v783 = vadd.f32 %v776, %v781
        %784 = vst.msk [vmem:[#allocation2] sm:$0xff] %vm755, %v783
      $region92: #{bert_tagger_forward.1} parent=87 // pred_fallthru
        _
      %v785 = vld [vmem:[#allocation2] sm:$0xff]
      %v786 = vld [vmem:[%s704] sm:$0xff]
      %v787 = vld [vmem:[%s704 + $0x8] sm:$0xff]
      %v788 = vld [vmem:[%s704 + $0x10] sm:$0xff]
      %v789 = vld [vmem:[%s704 + $0x18] sm:$0xff]
      %v790 = vld [vmem:[%s707] sm:$0x1]
      %v792 = vlaneseq
      %v793 = vshrl.u32 %v792, 7
      %v794 = vsub.s32 0, %v793
      %v795 = vrot.slane %v790, %v794
      %vm797 = vcmask 261120
      %v799 = vsel %vm797, %v785, 0
      %801 = vmatprep.subr.mxu0 0.0
      %802 = vmatpush1.msra.mxu0 %v786
      %803 = vmatprep.subr.mxu0 0.0
      %804 = vmatpush1.msra.mxu0 %v787
      %805 = vmatprep.subr.mxu0 0.0
      %806 = vmatpush1.msra.mxu0 %v788
      %807 = vmatprep.subr.mxu0 0.0
      %808 = vmatpush1.msra.mxu0 %v789
      %809 = vmatprep.subr.mxu0 0.0
      %810 = vmatpush1.msra.mxu0 0.0
      %811 = vmatprep.subr.mxu0 0.0
      %812 = vmatpush1.msra.mxu0 0.0
      %813 = vmatprep.subr.mxu0 0.0
      %814 = vmatpush1.msra.mxu0 0.0
      %815 = vmatprep.subr.mxu0 0.0
      %816 = vmatpush1.msra.mxu0 0.0
      %817 = vmatprep.subr.mxu0 0.0
      %818 = vmatpush1.msra.mxu0 0.0
      %819 = vmatprep.subr.mxu0 0.0
      %820 = vmatpush1.msra.mxu0 0.0
      %821 = vmatprep.subr.mxu0 0.0
      %822 = vmatpush1.msra.mxu0 0.0
      %823 = vmatprep.subr.mxu0 0.0
      %824 = vmatpush1.msra.mxu0 0.0
      %825 = vmatprep.subr.mxu0 0.0
      %826 = vmatpush1.msra.mxu0 0.0
      %827 = vmatprep.subr.mxu0 0.0
      %828 = vmatpush1.msra.mxu0 0.0
      %829 = vmatprep.subr.mxu0 0.0
      %830 = vmatpush1.msra.mxu0 0.0
      %831 = vmatprep.subr.mxu0 0.0
      %832 = vmatpush1.msra.mxu0 0.0
      %833 = vmatprep.subr.mxu0 0.0
      %834 = vmatpush1.msra.mxu0 0.0
      %835 = vmatprep.subr.mxu0 0.0
      %836 = vmatpush1.msra.mxu0 0.0
      %837 = vmatprep.subr.mxu0 0.0
      %838 = vmatpush1.msra.mxu0 0.0
      %839 = vmatprep.subr.mxu0 0.0
      %840 = vmatpush1.msra.mxu0 0.0
      %841 = vmatprep.subr.mxu0 0.0
      %842 = vmatpush1.msra.mxu0 0.0
      %843 = vmatprep.subr.mxu0 0.0
      %844 = vmatpush1.msra.mxu0 0.0
      %845 = vmatprep.subr.mxu0 0.0
      %846 = vmatpush1.msra.mxu0 0.0
      %847 = vmatprep.subr.mxu0 0.0
      %848 = vmatpush1.msra.mxu0 0.0
      %849 = vmatprep.subr.mxu0 0.0
      %850 = vmatpush1.msra.mxu0 0.0
      %851 = vmatprep.subr.mxu0 0.0
      %852 = vmatpush1.msra.mxu0 0.0
      %853 = vmatprep.subr.mxu0 0.0
      %854 = vmatpush1.msra.mxu0 0.0
      %855 = vmatprep.subr.mxu0 0.0
      %856 = vmatpush1.msra.mxu0 0.0
      %857 = vmatprep.subr.mxu0 0.0
      %858 = vmatpush1.msra.mxu0 0.0
      %859 = vmatprep.subr.mxu0 0.0
      %860 = vmatpush1.msra.mxu0 0.0
      %861 = vmatprep.subr.mxu0 0.0
      %862 = vmatpush1.msra.mxu0 0.0
      %863 = vmatprep.subr.mxu0 0.0
      %864 = vmatpush1.msra.mxu0 0.0
      %865 = vmatprep.mubr.f32.mxu0 0.0
      %866 = vmatmul.mubr.f32.gmra.mrb[0].mxu0 %v799
      %v867 = vpop.f32.mrb[0].mxu0
      %v868 = vadd.f32 %v795, %v867
      %v869 = vpop.f32.mrb[0].mxu0
      %870 = vdwg.mxu0
      %v871 = vld [vmem:[%s712] sm:$0xff]
      %v872 = vld [vmem:[%s712 + $0x8] sm:$0xff]
      %v873 = vld [vmem:[%s712 + $0x10] sm:$0xff]
      %v874 = vld [vmem:[%s712 + $0x18] sm:$0xff]
      %v875 = vld [vmem:[%s715] sm:$0x1]
      %877 = vrot.lane.b32.xlu0 %v868, 96
      %v878 = vpop.permute.xlu0 %877
      %vm879 = vcmask 64512
      %v880 = vsel %vm879, %v868, 0
      %v882 = vsel %vm879, %v878, 0
      %884 = vmatprep.subr.mxu0 0.0
      %885 = vmatpush1.xpose.msra.mxu0 %v882
      %886 = vmatprep.subr.mxu0 0.0
      %887 = vmatpush1.xpose.msra.mxu0 0.0
      %888 = vmatprep.subr.mxu0 0.0
      %889 = vmatpush1.xpose.msra.mxu0 0.0
      %890 = vmatprep.subr.mxu0 0.0
      %891 = vmatpush1.xpose.msra.mxu0 0.0
      %892 = vmatprep.subr.mxu0 0.0
      %893 = vmatpush1.xpose.msra.mxu0 0.0
      %894 = vmatprep.subr.mxu0 0.0
      %895 = vmatpush1.xpose.msra.mxu0 0.0
      %896 = vmatprep.subr.mxu0 0.0
      %897 = vmatpush1.xpose.msra.mxu0 0.0
      %898 = vmatprep.subr.mxu0 0.0
      %899 = vmatpush1.xpose.msra.mxu0 0.0
      %900 = vmatprep.subr.mxu0 0.0
      %901 = vmatpush1.xpose.msra.mxu0 0.0
      %902 = vmatprep.subr.mxu0 0.0
      %903 = vmatpush1.xpose.msra.mxu0 0.0
      %904 = vmatprep.subr.mxu0 0.0
      %905 = vmatpush1.xpose.msra.mxu0 0.0
      %906 = vmatprep.subr.mxu0 0.0
      %907 = vmatpush1.xpose.msra.mxu0 0.0
      %908 = vmatprep.subr.mxu0 0.0
      %909 = vmatpush1.xpose.msra.mxu0 0.0
      %910 = vmatprep.subr.mxu0 0.0
      %911 = vmatpush1.xpose.msra.mxu0 0.0
      %912 = vmatprep.subr.mxu0 0.0
      %913 = vmatpush1.xpose.msra.mxu0 0.0
      %914 = vmatprep.subr.mxu0 0.0
      %915 = vmatpush1.xpose.msra.mxu0 0.0
      %916 = vmatprep.subr.mxu0 0.0
      %917 = vmatpush1.xpose.msra.mxu0 0.0
      %918 = vmatprep.subr.mxu0 0.0
      %919 = vmatpush1.xpose.msra.mxu0 0.0
      %920 = vmatprep.subr.mxu0 0.0
      %921 = vmatpush1.xpose.msra.mxu0 0.0
      %922 = vmatprep.subr.mxu0 0.0
      %923 = vmatpush1.xpose.msra.mxu0 0.0
      %924 = vmatprep.subr.mxu0 0.0
      %925 = vmatpush1.xpose.msra.mxu0 0.0
      %926 = vmatprep.subr.mxu0 0.0
      %927 = vmatpush1.xpose.msra.mxu0 0.0
      %928 = vmatprep.subr.mxu0 0.0
      %929 = vmatpush1.xpose.msra.mxu0 0.0
      %930 = vmatprep.subr.mxu0 0.0
      %931 = vmatpush1.xpose.msra.mxu0 0.0
      %932 = vmatprep.subr.mxu0 0.0
      %933 = vmatpush1.xpose.msra.mxu0 0.0
      %934 = vmatprep.subr.mxu0 0.0
      %935 = vmatpush1.xpose.msra.mxu0 0.0
      %936 = vmatprep.subr.mxu0 0.0
      %937 = vmatpush1.xpose.msra.mxu0 0.0
      %938 = vmatprep.subr.mxu0 0.0
      %939 = vmatpush1.xpose.msra.mxu0 0.0
      %940 = vmatprep.subr.mxu0 0.0
      %941 = vmatpush1.xpose.msra.mxu0 0.0
      %942 = vmatprep.subr.mxu0 0.0
      %943 = vmatpush1.xpose.msra.mxu0 0.0
      %944 = vmatprep.subr.mxu0 0.0
      %945 = vmatpush1.xpose.msra.mxu0 0.0
      %946 = vmatprep.subr.mxu0 0.0
      %947 = vmatpush1.xpose.msra.mxu0 0.0
      %948 = vmatprep.mubr.f32.mxu0 0.0
      %949 = vmatmul.mubr.f32.gmra.mrb[0].mxu0 %v880
      %v950 = vpop.f32.mrb[0].mxu0
      %v951 = vadd.f32 0.0, %v950
      %v952 = vpop.f32.mrb[0].mxu0
      %953 = vdwg.mxu0
      %v954 = vmul.f32 %v951, 0.35355338
      %v955 = vsel %vm879, %v954, -inf
      %956 = vmax.xlane.f32.xlu0 %v955
      %v957 = vpop.xlane.xlu0 %956
      %v958 = vsub.f32 %v954, %v957
      %v959 = vmul.f32 %v958, 1.442695
      %v960 = vpow.pop %v959
      %v961 = vsel %vm879, %v960, 0.0
      %962 = vadd.xlane.f32.xlu0 %v961
      %v963 = vpop.xlane.xlu0 %962
      %v964 = vrcp.pop %v963
      %v965 = vmul.f32 %v960, %v964
      %966 = vrot.lane.b32.xlu0 %v868, 64
      %v967 = vpop.permute.xlu0 %966
      %v970 = vsel %vm879, %v965, 0
      %972 = vmatprep.subr.mxu0 0.0
      %973 = vmatpush1.msra.mxu0 %v967
      %974 = vmatprep.subr.mxu0 0.0
      %975 = vmatpush1.msra.mxu0 0.0
      %976 = vmatprep.subr.mxu0 0.0
      %977 = vmatpush1.msra.mxu0 0.0
      %978 = vmatprep.subr.mxu0 0.0
      %979 = vmatpush1.msra.mxu0 0.0
      %980 = vmatprep.subr.mxu0 0.0
      %981 = vmatpush1.msra.mxu0 0.0
      %982 = vmatprep.subr.mxu0 0.0
      %983 = vmatpush1.msra.mxu0 0.0
      %984 = vmatprep.subr.mxu0 0.0
      %985 = vmatpush1.msra.mxu0 0.0
      %986 = vmatprep.subr.mxu0 0.0
      %987 = vmatpush1.msra.mxu0 0.0
      %988 = vmatprep.subr.mxu0 0.0
      %989 = vmatpush1.msra.mxu0 0.0
      %990 = vmatprep.subr.mxu0 0.0
      %991 = vmatpush1.msra.mxu0 0.0
      %992 = vmatprep.subr.mxu0 0.0
      %993 = vmatpush1.msra.mxu0 0.0
      %994 = vmatprep.subr.mxu0 0.0
      %995 = vmatpush1.msra.mxu0 0.0
      %996 = vmatprep.subr.mxu0 0.0
      %997 = vmatpush1.msra.mxu0 0.0
      %998 = vmatprep.subr.mxu0 0.0
      %999 = vmatpush1.msra.mxu0 0.0
      %1000 = vmatprep.subr.mxu0 0.0
      %1001 = vmatpush1.msra.mxu0 0.0
      %1002 = vmatprep.subr.mxu0 0.0
      %1003 = vmatpush1.msra.mxu0 0.0
      %1004 = vmatprep.subr.mxu0 0.0
      %1005 = vmatpush1.msra.mxu0 0.0
      %1006 = vmatprep.subr.mxu0 0.0
      %1007 = vmatpush1.msra.mxu0 0.0
      %1008 = vmatprep.subr.mxu0 0.0
      %1009 = vmatpush1.msra.mxu0 0.0
      %1010 = vmatprep.subr.mxu0 0.0
      %1011 = vmatpush1.msra.mxu0 0.0
      %1012 = vmatprep.subr.mxu0 0.0
      %1013 = vmatpush1.msra.mxu0 0.0
      %1014 = vmatprep.subr.mxu0 0.0
      %1015 = vmatpush1.msra.mxu0 0.0
      %1016 = vmatprep.subr.mxu0 0.0
      %1017 = vmatpush1.msra.mxu0 0.0
      %1018 = vmatprep.subr.mxu0 0.0
      %1019 = vmatpush1.msra.mxu0 0.0
      %1020 = vmatprep.subr.mxu0 0.0
      %1021 = vmatpush1.msra.mxu0 0.0
      %1022 = vmatprep.subr.mxu0 0.0
      %1023 = vmatpush1.msra.mxu0 0.0
      %1024 = vmatprep.subr.mxu0 0.0
      %1025 = vmatpush1.msra.mxu0 0.0
      %1026 = vmatprep.subr.mxu0 0.0
      %1027 = vmatpush1.msra.mxu0 0.0
      %1028 = vmatprep.subr.mxu0 0.0
      %1029 = vmatpush1.msra.mxu0 0.0
      %1030 = vmatprep.subr.mxu0 0.0
      %1031 = vmatpush1.msra.mxu0 0.0
      %1032 = vmatprep.subr.mxu0 0.0
      %1033 = vmatpush1.msra.mxu0 0.0
      %1034 = vmatprep.subr.mxu0 0.0
      %1035 = vmatpush1.msra.mxu0 0.0
      %1036 = vmatprep.mubr.f32.mxu0 0.0
      %1037 = vmatmul.mubr.f32.gmra.mrb[0].mxu0 %v970
      %v1038 = vpop.f32.mrb[0].mxu0
      %v1039 = vadd.f32 0.0, %v1038
      %v1040 = vpop.f32.mrb[0].mxu0
      %1041 = vdwg.mxu0
      %v1043 = vsel %vm879, %v1039, 0
      %1045 = vmatprep.subr.mxu0 0.0
      %1046 = vmatpush1.msra.mxu0 %v871
      %1047 = vmatprep.subr.mxu0 0.0
      %1048 = vmatpush1.msra.mxu0 0.0
      %1049 = vmatprep.subr.mxu0 0.0
      %1050 = vmatpush1.msra.mxu0 0.0
      %1051 = vmatprep.subr.mxu0 0.0
      %1052 = vmatpush1.msra.mxu0 0.0
      %1053 = vmatprep.subr.mxu0 0.0
      %1054 = vmatpush1.msra.mxu0 0.0
      %1055 = vmatprep.subr.mxu0 0.0
      %1056 = vmatpush1.msra.mxu0 0.0
      %1057 = vmatprep.subr.mxu0 0.0
      %1058 = vmatpush1.msra.mxu0 0.0
      %1059 = vmatprep.subr.mxu0 0.0
      %1060 = vmatpush1.msra.mxu0 0.0
      %1061 = vmatprep.subr.mxu0 0.0
      %1062 = vmatpush1.msra.mxu0 0.0
      %1063 = vmatprep.subr.mxu0 0.0
      %1064 = vmatpush1.msra.mxu0 0.0
      %1065 = vmatprep.subr.mxu0 0.0
      %1066 = vmatpush1.msra.mxu0 0.0
      %1067 = vmatprep.subr.mxu0 0.0
      %1068 = vmatpush1.msra.mxu0 0.0
      %1069 = vmatprep.subr.mxu0 0.0
      %1070 = vmatpush1.msra.mxu0 0.0
      %1071 = vmatprep.subr.mxu0 0.0
      %1072 = vmatpush1.msra.mxu0 0.0
      %1073 = vmatprep.subr.mxu0 0.0
      %1074 = vmatpush1.msra.mxu0 0.0
      %1075 = vmatprep.subr.mxu0 0.0
      %1076 = vmatpush1.msra.mxu0 0.0
      %1077 = vmatprep.subr.mxu0 0.0
      %1078 = vmatpush1.msra.mxu0 0.0
      %1079 = vmatprep.subr.mxu0 0.0
      %1080 = vmatpush1.msra.mxu0 0.0
      %1081 = vmatprep.subr.mxu0 0.0
      %1082 = vmatpush1.msra.mxu0 0.0
      %1083 = vmatprep.subr.mxu0 0.0
      %1084 = vmatpush1.msra.mxu0 0.0
      %1085 = vmatprep.subr.mxu0 0.0
      %1086 = vmatpush1.msra.mxu0 0.0
      %1087 = vmatprep.subr.mxu0 0.0
      %1088 = vmatpush1.msra.mxu0 0.0
      %1089 = vmatprep.subr.mxu0 0.0
      %1090 = vmatpush1.msra.mxu0 0.0
      %1091 = vmatprep.subr.mxu0 0.0
      %1092 = vmatpush1.msra.mxu0 0.0
      %1093 = vmatprep.subr.mxu0 0.0
      %1094 = vmatpush1.msra.mxu0 0.0
      %1095 = vmatprep.subr.mxu0 0.0
      %1096 = vmatpush1.msra.mxu0 0.0
      %1097 = vmatprep.subr.mxu0 0.0
      %1098 = vmatpush1.msra.mxu0 0.0
      %1099 = vmatprep.subr.mxu0 0.0
      %1100 = vmatpush1.msra.mxu0 0.0
      %1101 = vmatprep.subr.mxu0 0.0
      %1102 = vmatpush1.msra.mxu0 0.0
      %1103 = vmatprep.subr.mxu0 0.0
      %1104 = vmatpush1.msra.mxu0 0.0
      %1105 = vmatprep.subr.mxu0 0.0
      %1106 = vmatpush1.msra.mxu0 0.0
      %1107 = vmatprep.subr.mxu0 0.0
      %1108 = vmatpush1.msra.mxu0 0.0
      %1109 = vmatprep.mubr.f32.mxu0 0.0
      %1110 = vmatmul.mubr.f32.gmra.mrb[0].mxu0 %v1043
      %v1111 = vpop.f32.mrb[0].mxu0
      %v1112 = vadd.f32 0.0, %v1111
      %v1113 = vpop.f32.mrb[0].mxu0
      %1114 = vdwg.mxu0
      %v1116 = vlaneseq
      %v1117 = vshrl.u32 %v1116, 7
      %v1118 = vsub.s32 0, %v1117
      %v1119 = vrot.slane %v875, %v1118
      %v1121 = vadd.f32 %v1119, %v1112
      %1122 = vrot.lane.b32.xlu0 %v868, 120
      %v1123 = vpop.permute.xlu0 %1122
      %1124 = vrot.lane.b32.xlu0 %v868, 88
      %v1125 = vpop.permute.xlu0 %1124
      %v1126 = vsel %vm879, %v1123, 0
      %v1128 = vsel %vm879, %v1125, 0
      %1130 = vmatprep.subr.mxu0 0.0
      %1131 = vmatpush1.xpose.msra.mxu0 %v1128
      %1132 = vmatprep.subr.mxu0 0.0
      %1133 = vmatpush1.xpose.msra.mxu0 0.0
      %1134 = vmatprep.subr.mxu0 0.0
      %1135 = vmatpush1.xpose.msra.mxu0 0.0
      %1136 = vmatprep.subr.mxu0 0.0
      %1137 = vmatpush1.xpose.msra.mxu0 0.0
      %1138 = vmatprep.subr.mxu0 0.0
      %1139 = vmatpush1.xpose.msra.mxu0 0.0
      %1140 = vmatprep.subr.mxu0 0.0
      %1141 = vmatpush1.xpose.msra.mxu0 0.0
      %1142 = vmatprep.subr.mxu0 0.0
      %1143 = vmatpush1.xpose.msra.mxu0 0.0
      %1144 = vmatprep.subr.mxu0 0.0
      %1145 = vmatpush1.xpose.msra.mxu0 0.0
      %1146 = vmatprep.subr.mxu0 0.0
      %1147 = vmatpush1.xpose.msra.mxu0 0.0
      %1148 = vmatprep.subr.mxu0 0.0
      %1149 = vmatpush1.xpose.msra.mxu0 0.0
      %1150 = vmatprep.subr.mxu0 0.0
      %1151 = vmatpush1.xpose.msra.mxu0 0.0
      %1152 = vmatprep.subr.mxu0 0.0
      %1153 = vmatpush1.xpose.msra.mxu0 0.0
      %1154 = vmatprep.subr.mxu0 0.0
      %1155 = vmatpush1.xpose.msra.mxu0 0.0
      %1156 = vmatprep.subr.mxu0 0.0
      %1157 = vmatpush1.xpose.msra.mxu0 0.0
      %1158 = vmatprep.subr.mxu0 0.0
      %1159 = vmatpush1.xpose.msra.mxu0 0.0
      %1160 = vmatprep.subr.mxu0 0.0
      %1161 = vmatpush1.xpose.msra.mxu0 0.0
      %1162 = vmatprep.subr.mxu0 0.0
      %1163 = vmatpush1.xpose.msra.mxu0 0.0
      %1164 = vmatprep.subr.mxu0 0.0
      %1165 = vmatpush1.xpose.msra.mxu0 0.0
      %1166 = vmatprep.subr.mxu0 0.0
      %1167 = vmatpush1.xpose.msra.mxu0 0.0
      %1168 = vmatprep.subr.mxu0 0.0
      %1169 = vmatpush1.xpose.msra.mxu0 0.0
      %1170 = vmatprep.subr.mxu0 0.0
      %1171 = vmatpush1.xpose.msra.mxu0 0.0
      %1172 = vmatprep.subr.mxu0 0.0
      %1173 = vmatpush1.xpose.msra.mxu0 0.0
      %1174 = vmatprep.subr.mxu0 0.0
      %1175 = vmatpush1.xpose.msra.mxu0 0.0
      %1176 = vmatprep.subr.mxu0 0.0
      %1177 = vmatpush1.xpose.msra.mxu0 0.0
      %1178 = vmatprep.subr.mxu0 0.0
      %1179 = vmatpush1.xpose.msra.mxu0 0.0
      %1180 = vmatprep.subr.mxu0 0.0
      %1181 = vmatpush1.xpose.msra.mxu0 0.0
      %1182 = vmatprep.subr.mxu0 0.0
      %1183 = vmatpush1.xpose.msra.mxu0 0.0
      %1184 = vmatprep.subr.mxu0 0.0
      %1185 = vmatpush1.xpose.msra.mxu0 0.0
      %1186 = vmatprep.subr.mxu0 0.0
      %1187 = vmatpush1.xpose.msra.mxu0 0.0
      %1188 = vmatprep.subr.mxu0 0.0
      %1189 = vmatpush1.xpose.msra.mxu0 0.0
      %1190 = vmatprep.subr.mxu0 0.0
      %1191 = vmatpush1.xpose.msra.mxu0 0.0
      %1192 = vmatprep.subr.mxu0 0.0
      %1193 = vmatpush1.xpose.msra.mxu0 0.0
      %1194 = vmatprep.mubr.f32.mxu0 0.0
      %1195 = vmatmul.mubr.f32.gmra.mrb[0].mxu0 %v1126
      %v1196 = vpop.f32.mrb[0].mxu0
      %v1197 = vadd.f32 0.0, %v1196
      %v1198 = vpop.f32.mrb[0].mxu0
      %1199 = vdwg.mxu0
      %v1200 = vmul.f32 %v1197, 0.35355338
      %v1201 = vsel %vm879, %v1200, -inf
      %1202 = vmax.xlane.f32.xlu0 %v1201
      %v1203 = vpop.xlane.xlu0 %1202
      %v1204 = vsub.f32 %v1200, %v1203
      %v1205 = vmul.f32 %v1204, 1.442695
      %v1206 = vpow.pop %v1205
      %v1207 = vsel %vm879, %v1206, 0.0
      %1208 = vadd.xlane.f32.xlu0 %v1207
      %v1209 = vpop.xlane.xlu0 %1208
      %v1210 = vrcp.pop %v1209
      %v1211 = vmul.f32 %v1206, %v1210
      %1212 = vrot.lane.b32.xlu0 %v868, 56
      %v1213 = vpop.permute.xlu0 %1212
      %v1216 = vsel %vm879, %v1211, 0
      %1218 = vmatprep.subr.mxu0 0.0
      %1219 = vmatpush1.msra.mxu0 %v1213
      %1220 = vmatprep.subr.mxu0 0.0
      %1221 = vmatpush1.msra.mxu0 0.0
      %1222 = vmatprep.subr.mxu0 0.0
      %1223 = vmatpush1.msra.mxu0 0.0
      %1224 = vmatprep.subr.mxu0 0.0
      %1225 = vmatpush1.msra.mxu0 0.0
      %1226 = vmatprep.subr.mxu0 0.0
      %1227 = vmatpush1.msra.mxu0 0.0
      %1228 = vmatprep.subr.mxu0 0.0
      %1229 = vmatpush1.msra.mxu0 0.0
      %1230 = vmatprep.subr.mxu0 0.0
      %1231 = vmatpush1.msra.mxu0 0.0
      %1232 = vmatprep.subr.mxu0 0.0
      %1233 = vmatpush1.msra.mxu0 0.0
      %1234 = vmatprep.subr.mxu0 0.0
      %1235 = vmatpush1.msra.mxu0 0.0
      %1236 = vmatprep.subr.mxu0 0.0
      %1237 = vmatpush1.msra.mxu0 0.0
      %1238 = vmatprep.subr.mxu0 0.0
      %1239 = vmatpush1.msra.mxu0 0.0
      %1240 = vmatprep.subr.mxu0 0.0
      %1241 = vmatpush1.msra.mxu0 0.0
      %1242 = vmatprep.subr.mxu0 0.0
      %1243 = vmatpush1.msra.mxu0 0.0
      %1244 = vmatprep.subr.mxu0 0.0
      %1245 = vmatpush1.msra.mxu0 0.0
      %1246 = vmatprep.subr.mxu0 0.0
      %1247 = vmatpush1.msra.mxu0 0.0
      %1248 = vmatprep.subr.mxu0 0.0
      %1249 = vmatpush1.msra.mxu0 0.0
      %1250 = vmatprep.subr.mxu0 0.0
      %1251 = vmatpush1.msra.mxu0 0.0
      %1252 = vmatprep.subr.mxu0 0.0
      %1253 = vmatpush1.msra.mxu0 0.0
      %1254 = vmatprep.subr.mxu0 0.0
      %1255 = vmatpush1.msra.mxu0 0.0
      %1256 = vmatprep.subr.mxu0 0.0
      %1257 = vmatpush1.msra.mxu0 0.0
      %1258 = vmatprep.subr.mxu0 0.0
      %1259 = vmatpush1.msra.mxu0 0.0
      %1260 = vmatprep.subr.mxu0 0.0
      %1261 = vmatpush1.msra.mxu0 0.0
      %1262 = vmatprep.subr.mxu0 0.0
      %1263 = vmatpush1.msra.mxu0 0.0
      %1264 = vmatprep.subr.mxu0 0.0
      %1265 = vmatpush1.msra.mxu0 0.0
      %1266 = vmatprep.subr.mxu0 0.0
      %1267 = vmatpush1.msra.mxu0 0.0
      %1268 = vmatprep.subr.mxu0 0.0
      %1269 = vmatpush1.msra.mxu0 0.0
      %1270 = vmatprep.subr.mxu0 0.0
      %1271 = vmatpush1.msra.mxu0 0.0
      %1272 = vmatprep.subr.mxu0 0.0
      %1273 = vmatpush1.msra.mxu0 0.0
      %1274 = vmatprep.subr.mxu0 0.0
      %1275 = vmatpush1.msra.mxu0 0.0
      %1276 = vmatprep.subr.mxu0 0.0
      %1277 = vmatpush1.msra.mxu0 0.0
      %1278 = vmatprep.subr.mxu0 0.0
      %1279 = vmatpush1.msra.mxu0 0.0
      %1280 = vmatprep.subr.mxu0 0.0
      %1281 = vmatpush1.msra.mxu0 0.0
      %1282 = vmatprep.mubr.f32.mxu0 0.0
      %1283 = vmatmul.mubr.f32.gmra.mrb[0].mxu0 %v1216
      %v1284 = vpop.f32.mrb[0].mxu0
      %v1285 = vadd.f32 0.0, %v1284
      %v1286 = vpop.f32.mrb[0].mxu0
      %1287 = vdwg.mxu0
      %v1289 = vsel %vm879, %v1285, 0
      %1291 = vmatprep.subr.mxu0 0.0
      %1292 = vmatpush1.msra.mxu0 %v872
      %1293 = vmatprep.subr.mxu0 0.0
      %1294 = vmatpush1.msra.mxu0 0.0
      %1295 = vmatprep.subr.mxu0 0.0
      %1296 = vmatpush1.msra.mxu0 0.0
      %1297 = vmatprep.subr.mxu0 0.0
      %1298 = vmatpush1.msra.mxu0 0.0
      %1299 = vmatprep.subr.mxu0 0.0
      %1300 = vmatpush1.msra.mxu0 0.0
      %1301 = vmatprep.subr.mxu0 0.0
      %1302 = vmatpush1.msra.mxu0 0.0
      %1303 = vmatprep.subr.mxu0 0.0
      %1304 = vmatpush1.msra.mxu0 0.0
      %1305 = vmatprep.subr.mxu0 0.0
      %1306 = vmatpush1.msra.mxu0 0.0
      %1307 = vmatprep.subr.mxu0 0.0
      %1308 = vmatpush1.msra.mxu0 0.0
      %1309 = vmatprep.subr.mxu0 0.0
      %1310 = vmatpush1.msra.mxu0 0.0
      %1311 = vmatprep.subr.mxu0 0.0
      %1312 = vmatpush1.msra.mxu0 0.0
      %1313 = vmatprep.subr.mxu0 0.0
      %1314 = vmatpush1.msra.mxu0 0.0
      %1315 = vmatprep.subr.mxu0 0.0
      %1316 = vmatpush1.msra.mxu0 0.0
      %1317 = vmatprep.subr.mxu0 0.0
      %1318 = vmatpush1.msra.mxu0 0.0
      %1319 = vmatprep.subr.mxu0 0.0
      %1320 = vmatpush1.msra.mxu0 0.0
      %1321 = vmatprep.subr.mxu0 0.0
      %1322 = vmatpush1.msra.mxu0 0.0
      %1323 = vmatprep.subr.mxu0 0.0
      %1324 = vmatpush1.msra.mxu0 0.0
      %1325 = vmatprep.subr.mxu0 0.0
      %1326 = vmatpush1.msra.mxu0 0.0
      %1327 = vmatprep.subr.mxu0 0.0
      %1328 = vmatpush1.msra.mxu0 0.0
      %1329 = vmatprep.subr.mxu0 0.0
      %1330 = vmatpush1.msra.mxu0 0.0
      %1331 = vmatprep.subr.mxu0 0.0
      %1332 = vmatpush1.msra.mxu0 0.0
      %1333 = vmatprep.subr.mxu0 0.0
      %1334 = vmatpush1.msra.mxu0 0.0
      %1335 = vmatprep.subr.mxu0 0.0
      %1336 = vmatpush1.msra.mxu0 0.0
      %1337 = vmatprep.subr.mxu0 0.0
      %1338 = vmatpush1.msra.mxu0 0.0
      %1339 = vmatprep.subr.mxu0 0.0
      %1340 = vmatpush1.msra.mxu0 0.0
      %1341 = vmatprep.subr.mxu0 0.0
      %1342 = vmatpush1.msra.mxu0 0.0
      %1343 = vmatprep.subr.mxu0 0.0
      %1344 = vmatpush1.msra.mxu0 0.0
      %1345 = vmatprep.subr.mxu0 0.0
      %1346 = vmatpush1.msra.mxu0 0.0
      %1347 = vmatprep.subr.mxu0 0.0
      %1348 = vmatpush1.msra.mxu0 0.0
      %1349 = vmatprep.subr.mxu0 0.0
      %1350 = vmatpush1.msra.mxu0 0.0
      %1351 = vmatprep.subr.mxu0 0.0
      %1352 = vmatpush1.msra.mxu0 0.0
      %1353 = vmatprep.subr.mxu0 0.0
      %1354 = vmatpush1.msra.mxu0 0.0
      %1355 = vmatprep.mubr.f32.mxu0 0.0
      %1356 = vmatmul.mubr.f32.gmra.mrb[0].mxu0 %v1289
      %v1357 = vpop.f32.mrb[0].mxu0
      %v1358 = vadd.f32 0.0, %v1357
      %v1359 = vpop.f32.mrb[0].mxu0
      %1360 = vdwg.mxu0
      %v1361 = vadd.f32 %v1121, %v1358
      %1362 = vrot.lane.b32.xlu0 %v868, 112
      %v1363 = vpop.permute.xlu0 %1362
      %1364 = vrot.lane.b32.xlu0 %v868, 80
      %v1365 = vpop.permute.xlu0 %1364
      %v1366 = vsel %vm879, %v1363, 0
      %v1368 = vsel %vm879, %v1365, 0
      %1370 = vmatprep.subr.mxu0 0.0
      %1371 = vmatpush1.xpose.msra.mxu0 %v1368
      %1372 = vmatprep.subr.mxu0 0.0
      %1373 = vmatpush1.xpose.msra.mxu0 0.0
      %1374 = vmatprep.subr.mxu0 0.0
      %1375 = vmatpush1.xpose.msra.mxu0 0.0
      %1376 = vmatprep.subr.mxu0 0.0
      %1377 = vmatpush1.xpose.msra.mxu0 0.0
      %1378 = vmatprep.subr.mxu0 0.0
      %1379 = vmatpush1.xpose.msra.mxu0 0.0
      %1380 = vmatprep.subr.mxu0 0.0
      %1381 = vmatpush1.xpose.msra.mxu0 0.0
      %1382 = vmatprep.subr.mxu0 0.0
      %1383 = vmatpush1.xpose.msra.mxu0 0.0
      %1384 = vmatprep.subr.mxu0 0.0
      %1385 = vmatpush1.xpose.msra.mxu0 0.0
      %1386 = vmatprep.subr.mxu0 0.0
      %1387 = vmatpush1.xpose.msra.mxu0 0.0
      %1388 = vmatprep.subr.mxu0 0.0
      %1389 = vmatpush1.xpose.msra.mxu0 0.0
      %1390 = vmatprep.subr.mxu0 0.0
      %1391 = vmatpush1.xpose.msra.mxu0 0.0
      %1392 = vmatprep.subr.mxu0 0.0
      %1393 = vmatpush1.xpose.msra.mxu0 0.0
      %1394 = vmatprep.subr.mxu0 0.0
      %1395 = vmatpush1.xpose.msra.mxu0 0.0
      %1396 = vmatprep.subr.mxu0 0.0
      %1397 = vmatpush1.xpose.msra.mxu0 0.0
      %1398 = vmatprep.subr.mxu0 0.0
      %1399 = vmatpush1.xpose.msra.mxu0 0.0
      %1400 = vmatprep.subr.mxu0 0.0
      %1401 = vmatpush1.xpose.msra.mxu0 0.0
      %1402 = vmatprep.subr.mxu0 0.0
      %1403 = vmatpush1.xpose.msra.mxu0 0.0
      %1404 = vmatprep.subr.mxu0 0.0
      %1405 = vmatpush1.xpose.msra.mxu0 0.0
      %1406 = vmatprep.subr.mxu0 0.0
      %1407 = vmatpush1.xpose.msra.mxu0 0.0
      %1408 = vmatprep.subr.mxu0 0.0
      %1409 = vmatpush1.xpose.msra.mxu0 0.0
      %1410 = vmatprep.subr.mxu0 0.0
      %1411 = vmatpush1.xpose.msra.mxu0 0.0
      %1412 = vmatprep.subr.mxu0 0.0
      %1413 = vmatpush1.xpose.msra.mxu0 0.0
      %1414 = vmatprep.subr.mxu0 0.0
      %1415 = vmatpush1.xpose.msra.mxu0 0.0
      %1416 = vmatprep.subr.mxu0 0.0
      %1417 = vmatpush1.xpose.msra.mxu0 0.0
      %1418 = vmatprep.subr.mxu0 0.0
      %1419 = vmatpush1.xpose.msra.mxu0 0.0
      %1420 = vmatprep.subr.mxu0 0.0
      %1421 = vmatpush1.xpose.msra.mxu0 0.0
      %1422 = vmatprep.subr.mxu0 0.0
      %1423 = vmatpush1.xpose.msra.mxu0 0.0
      %1424 = vmatprep.subr.mxu0 0.0
      %1425 = vmatpush1.xpose.msra.mxu0 0.0
      %1426 = vmatprep.subr.mxu0 0.0
      %1427 = vmatpush1.xpose.msra.mxu0 0.0
      %1428 = vmatprep.subr.mxu0 0.0
      %1429 = vmatpush1.xpose.msra.mxu0 0.0
      %1430 = vmatprep.subr.mxu0 0.0
      %1431 = vmatpush1.xpose.msra.mxu0 0.0
      %1432 = vmatprep.subr.mxu0 0.0
      %1433 = vmatpush1.xpose.msra.mxu0 0.0
      %1434 = vmatprep.mubr.f32.mxu0 0.0
      %1435 = vmatmul.mubr.f32.gmra.mrb[0].mxu0 %v1366
      %v1436 = vpop.f32.mrb[0].mxu0
      %v1437 = vadd.f32 0.0, %v1436
      %v1438 = vpop.f32.mrb[0].mxu0
      %1439 = vdwg.mxu0
      %v1440 = vmul.f32 %v1437, 0.35355338
      %v1441 = vsel %vm879, %v1440, -inf
      %1442 = vmax.xlane.f32.xlu0 %v1441
      %v1443 = vpop.xlane.xlu0 %1442
      %v1444 = vsub.f32 %v1440, %v1443
      %v1445 = vmul.f32 %v1444, 1.442695
      %v1446 = vpow.pop %v1445
      %v1447 = vsel %vm879, %v1446, 0.0
      %1448 = vadd.xlane.f32.xlu0 %v1447
      %v1449 = vpop.xlane.xlu0 %1448
      %v1450 = vrcp.pop %v1449
      %v1451 = vmul.f32 %v1446, %v1450
      %1452 = vrot.lane.b32.xlu0 %v868, 48
      %v1453 = vpop.permute.xlu0 %1452
      %v1456 = vsel %vm879, %v1451, 0
      %1458 = vmatprep.subr.mxu0 0.0
      %1459 = vmatpush1.msra.mxu0 %v1453
      %1460 = vmatprep.subr.mxu0 0.0
      %1461 = vmatpush1.msra.mxu0 0.0
      %1462 = vmatprep.subr.mxu0 0.0
      %1463 = vmatpush1.msra.mxu0 0.0
      %1464 = vmatprep.subr.mxu0 0.0
      %1465 = vmatpush1.msra.mxu0 0.0
      %1466 = vmatprep.subr.mxu0 0.0
      %1467 = vmatpush1.msra.mxu0 0.0
      %1468 = vmatprep.subr.mxu0 0.0
      %1469 = vmatpush1.msra.mxu0 0.0
      %1470 = vmatprep.subr.mxu0 0.0
      %1471 = vmatpush1.msra.mxu0 0.0
      %1472 = vmatprep.subr.mxu0 0.0
      %1473 = vmatpush1.msra.mxu0 0.0
      %1474 = vmatprep.subr.mxu0 0.0
      %1475 = vmatpush1.msra.mxu0 0.0
      %1476 = vmatprep.subr.mxu0 0.0
      %1477 = vmatpush1.msra.mxu0 0.0
      %1478 = vmatprep.subr.mxu0 0.0
      %1479 = vmatpush1.msra.mxu0 0.0
      %1480 = vmatprep.subr.mxu0 0.0
      %1481 = vmatpush1.msra.mxu0 0.0
      %1482 = vmatprep.subr.mxu0 0.0
      %1483 = vmatpush1.msra.mxu0 0.0
      %1484 = vmatprep.subr.mxu0 0.0
      %1485 = vmatpush1.msra.mxu0 0.0
      %1486 = vmatprep.subr.mxu0 0.0
      %1487 = vmatpush1.msra.mxu0 0.0
      %1488 = vmatprep.subr.mxu0 0.0
      %1489 = vmatpush1.msra.mxu0 0.0
      %1490 = vmatprep.subr.mxu0 0.0
      %1491 = vmatpush1.msra.mxu0 0.0
      %1492 = vmatprep.subr.mxu0 0.0
      %1493 = vmatpush1.msra.mxu0 0.0
      %1494 = vmatprep.subr.mxu0 0.0
      %1495 = vmatpush1.msra.mxu0 0.0
      %1496 = vmatprep.subr.mxu0 0.0
      %1497 = vmatpush1.msra.mxu0 0.0
      %1498 = vmatprep.subr.mxu0 0.0
      %1499 = vmatpush1.msra.mxu0 0.0
      %1500 = vmatprep.subr.mxu0 0.0
      %1501 = vmatpush1.msra.mxu0 0.0
      %1502 = vmatprep.subr.mxu0 0.0
      %1503 = vmatpush1.msra.mxu0 0.0
      %1504 = vmatprep.subr.mxu0 0.0
      %1505 = vmatpush1.msra.mxu0 0.0
      %1506 = vmatprep.subr.mxu0 0.0
      %1507 = vmatpush1.msra.mxu0 0.0
      %1508 = vmatprep.subr.mxu0 0.0
      %1509 = vmatpush1.msra.mxu0 0.0
      %1510 = vmatprep.subr.mxu0 0.0
      %1511 = vmatpush1.msra.mxu0 0.0
      %1512 = vmatprep.subr.mxu0 0.0
      %1513 = vmatpush1.msra.mxu0 0.0
      %1514 = vmatprep.subr.mxu0 0.0
      %1515 = vmatpush1.msra.mxu0 0.0
      %1516 = vmatprep.subr.mxu0 0.0
      %1517 = vmatpush1.msra.mxu0 0.0
      %1518 = vmatprep.subr.mxu0 0.0
      %1519 = vmatpush1.msra.mxu0 0.0
      %1520 = vmatprep.subr.mxu0 0.0
      %1521 = vmatpush1.msra.mxu0 0.0
      %1522 = vmatprep.mubr.f32.mxu0 0.0
      %1523 = vmatmul.mubr.f32.gmra.mrb[0].mxu0 %v1456
      %v1524 = vpop.f32.mrb[0].mxu0
      %v1525 = vadd.f32 0.0, %v1524
      %v1526 = vpop.f32.mrb[0].mxu0
      %1527 = vdwg.mxu0
      %v1529 = vsel %vm879, %v1525, 0
      %1531 = vmatprep.subr.mxu0 0.0
      %1532 = vmatpush1.msra.mxu0 %v873
      %1533 = vmatprep.subr.mxu0 0.0
      %1534 = vmatpush1.msra.mxu0 0.0
      %1535 = vmatprep.subr.mxu0 0.0
      %1536 = vmatpush1.msra.mxu0 0.0
      %1537 = vmatprep.subr.mxu0 0.0
      %1538 = vmatpush1.msra.mxu0 0.0
      %1539 = vmatprep.subr.mxu0 0.0
      %1540 = vmatpush1.msra.mxu0 0.0
      %1541 = vmatprep.subr.mxu0 0.0
      %1542 = vmatpush1.msra.mxu0 0.0
      %1543 = vmatprep.subr.mxu0 0.0
      %1544 = vmatpush1.msra.mxu0 0.0
      %1545 = vmatprep.subr.mxu0 0.0
      %1546 = vmatpush1.msra.mxu0 0.0
      %1547 = vmatprep.subr.mxu0 0.0
      %1548 = vmatpush1.msra.mxu0 0.0
      %1549 = vmatprep.subr.mxu0 0.0
      %1550 = vmatpush1.msra.mxu0 0.0
      %1551 = vmatprep.subr.mxu0 0.0
      %1552 = vmatpush1.msra.mxu0 0.0
      %1553 = vmatprep.subr.mxu0 0.0
      %1554 = vmatpush1.msra.mxu0 0.0
      %1555 = vmatprep.subr.mxu0 0.0
      %1556 = vmatpush1.msra.mxu0 0.0
      %1557 = vmatprep.subr.mxu0 0.0
      %1558 = vmatpush1.msra.mxu0 0.0
      %1559 = vmatprep.subr.mxu0 0.0
      %1560 = vmatpush1.msra.mxu0 0.0
      %1561 = vmatprep.subr.mxu0 0.0
      %1562 = vmatpush1.msra.mxu0 0.0
      %1563 = vmatprep.subr.mxu0 0.0
      %1564 = vmatpush1.msra.mxu0 0.0
      %1565 = vmatprep.subr.mxu0 0.0
      %1566 = vmatpush1.msra.mxu0 0.0
      %1567 = vmatprep.subr.mxu0 0.0
      %1568 = vmatpush1.msra.mxu0 0.0
      %1569 = vmatprep.subr.mxu0 0.0
      %1570 = vmatpush1.msra.mxu0 0.0
      %1571 = vmatprep.subr.mxu0 0.0
      %1572 = vmatpush1.msra.mxu0 0.0
      %1573 = vmatprep.subr.mxu0 0.0
      %1574 = vmatpush1.msra.mxu0 0.0
      %1575 = vmatprep.subr.mxu0 0.0
      %1576 = vmatpush1.msra.mxu0 0.0
      %1577 = vmatprep.subr.mxu0 0.0
      %1578 = vmatpush1.msra.mxu0 0.0
      %1579 = vmatprep.subr.mxu0 0.0
      %1580 = vmatpush1.msra.mxu0 0.0
      %1581 = vmatprep.subr.mxu0 0.0
      %1582 = vmatpush1.msra.mxu0 0.0
      %1583 = vmatprep.subr.mxu0 0.0
      %1584 = vmatpush1.msra.mxu0 0.0
      %1585 = vmatprep.subr.mxu0 0.0
      %1586 = vmatpush1.msra.mxu0 0.0
      %1587 = vmatprep.subr.mxu0 0.0
      %1588 = vmatpush1.msra.mxu0 0.0
      %1589 = vmatprep.subr.mxu0 0.0
      %1590 = vmatpush1.msra.mxu0 0.0
      %1591 = vmatprep.subr.mxu0 0.0
      %1592 = vmatpush1.msra.mxu0 0.0
      %1593 = vmatprep.subr.mxu0 0.0
      %1594 = vmatpush1.msra.mxu0 0.0
      %1595 = vmatprep.mubr.f32.mxu0 0.0
      %1596 = vmatmul.mubr.f32.gmra.mrb[0].mxu0 %v1529
      %v1597 = vpop.f32.mrb[0].mxu0
      %v1598 = vadd.f32 0.0, %v1597
      %v1599 = vpop.f32.mrb[0].mxu0
      %1600 = vdwg.mxu0
      %v1601 = vadd.f32 %v1361, %v1598
      %1602 = vrot.lane.b32.xlu0 %v868, 104
      %v1603 = vpop.permute.xlu0 %1602
      %1604 = vrot.lane.b32.xlu0 %v868, 72
      %v1605 = vpop.permute.xlu0 %1604
      %v1606 = vsel %vm879, %v1603, 0
      %v1608 = vsel %vm879, %v1605, 0
      %1610 = vmatprep.subr.mxu0 0.0
      %1611 = vmatpush1.xpose.msra.mxu0 %v1608
      %1612 = vmatprep.subr.mxu0 0.0
      %1613 = vmatpush1.xpose.msra.mxu0 0.0
      %1614 = vmatprep.subr.mxu0 0.0
      %1615 = vmatpush1.xpose.msra.mxu0 0.0
      %1616 = vmatprep.subr.mxu0 0.0
      %1617 = vmatpush1.xpose.msra.mxu0 0.0
      %1618 = vmatprep.subr.mxu0 0.0
      %1619 = vmatpush1.xpose.msra.mxu0 0.0
      %1620 = vmatprep.subr.mxu0 0.0
      %1621 = vmatpush1.xpose.msra.mxu0 0.0
      %1622 = vmatprep.subr.mxu0 0.0
      %1623 = vmatpush1.xpose.msra.mxu0 0.0
      %1624 = vmatprep.subr.mxu0 0.0
      %1625 = vmatpush1.xpose.msra.mxu0 0.0
      %1626 = vmatprep.subr.mxu0 0.0
      %1627 = vmatpush1.xpose.msra.mxu0 0.0
      %1628 = vmatprep.subr.mxu0 0.0
      %1629 = vmatpush1.xpose.msra.mxu0 0.0
      %1630 = vmatprep.subr.mxu0 0.0
      %1631 = vmatpush1.xpose.msra.mxu0 0.0
      %1632 = vmatprep.subr.mxu0 0.0
      %1633 = vmatpush1.xpose.msra.mxu0 0.0
      %1634 = vmatprep.subr.mxu0 0.0
      %1635 = vmatpush1.xpose.msra.mxu0 0.0
      %1636 = vmatprep.subr.mxu0 0.0
      %1637 = vmatpush1.xpose.msra.mxu0 0.0
      %1638 = vmatprep.subr.mxu0 0.0
      %1639 = vmatpush1.xpose.msra.mxu0 0.0
      %1640 = vmatprep.subr.mxu0 0.0
      %1641 = vmatpush1.xpose.msra.mxu0 0.0
      %1642 = vmatprep.subr.mxu0 0.0
      %1643 = vmatpush1.xpose.msra.mxu0 0.0
      %1644 = vmatprep.subr.mxu0 0.0
      %1645 = vmatpush1.xpose.msra.mxu0 0.0
      %1646 = vmatprep.subr.mxu0 0.0
      %1647 = vmatpush1.xpose.msra.mxu0 0.0
      %1648 = vmatprep.subr.mxu0 0.0
      %1649 = vmatpush1.xpose.msra.mxu0 0.0
      %1650 = vmatprep.subr.mxu0 0.0
      %1651 = vmatpush1.xpose.msra.mxu0 0.0
      %1652 = vmatprep.subr.mxu0 0.0
      %1653 = vmatpush1.xpose.msra.mxu0 0.0
      %1654 = vmatprep.subr.mxu0 0.0
      %1655 = vmatpush1.xpose.msra.mxu0 0.0
      %1656 = vmatprep.subr.mxu0 0.0
      %1657 = vmatpush1.xpose.msra.mxu0 0.0
      %1658 = vmatprep.subr.mxu0 0.0
      %1659 = vmatpush1.xpose.msra.mxu0 0.0
      %1660 = vmatprep.subr.mxu0 0.0
      %1661 = vmatpush1.xpose.msra.mxu0 0.0
      %1662 = vmatprep.subr.mxu0 0.0
      %1663 = vmatpush1.xpose.msra.mxu0 0.0
      %1664 = vmatprep.subr.mxu0 0.0
      %1665 = vmatpush1.xpose.msra.mxu0 0.0
      %1666 = vmatprep.subr.mxu0 0.0
      %1667 = vmatpush1.xpose.msra.mxu0 0.0
      %1668 = vmatprep.subr.mxu0 0.0
      %1669 = vmatpush1.xpose.msra.mxu0 0.0
      %1670 = vmatprep.subr.mxu0 0.0
      %1671 = vmatpush1.xpose.msra.mxu0 0.0
      %1672 = vmatprep.subr.mxu0 0.0
      %1673 = vmatpush1.xpose.msra.mxu0 0.0
      %1674 = vmatprep.mubr.f32.mxu0 0.0
      %1675 = vmatmul.mubr.f32.gmra.mrb[0].mxu0 %v1606
      %v1676 = vpop.f32.mrb[0].mxu0
      %v1677 = vadd.f32 0.0, %v1676
      %v1678 = vpop.f32.mrb[0].mxu0
      %1679 = vdwg.mxu0
      %v1680 = vmul.f32 %v1677, 0.35355338
      %v1681 = vsel %vm879, %v1680, -inf
      %1682 = vmax.xlane.f32.xlu0 %v1681
      %v1683 = vpop.xlane.xlu0 %1682
      %v1684 = vsub.f32 %v1680, %v1683
      %v1685 = vmul.f32 %v1684, 1.442695
      %v1686 = vpow.pop %v1685
      %v1687 = vsel %vm879, %v1686, 0.0
      %1688 = vadd.xlane.f32.xlu0 %v1687
      %v1689 = vpop.xlane.xlu0 %1688
      %v1690 = vrcp.pop %v1689
      %v1691 = vmul.f32 %v1686, %v1690
      %1692 = vrot.lane.b32.xlu0 %v868, 40
      %v1693 = vpop.permute.xlu0 %1692
      %v1696 = vsel %vm879, %v1691, 0
      %1698 = vmatprep.subr.mxu0 0.0
      %1699 = vmatpush1.msra.mxu0 %v1693
      %1700 = vmatprep.subr.mxu0 0.0
      %1701 = vmatpush1.msra.mxu0 0.0
      %1702 = vmatprep.subr.mxu0 0.0
      %1703 = vmatpush1.msra.mxu0 0.0
      %1704 = vmatprep.subr.mxu0 0.0
      %1705 = vmatpush1.msra.mxu0 0.0
      %1706 = vmatprep.subr.mxu0 0.0
      %1707 = vmatpush1.msra.mxu0 0.0
      %1708 = vmatprep.subr.mxu0 0.0
      %1709 = vmatpush1.msra.mxu0 0.0
      %1710 = vmatprep.subr.mxu0 0.0
      %1711 = vmatpush1.msra.mxu0 0.0
      %1712 = vmatprep.subr.mxu0 0.0
      %1713 = vmatpush1.msra.mxu0 0.0
      %1714 = vmatprep.subr.mxu0 0.0
      %1715 = vmatpush1.msra.mxu0 0.0
      %1716 = vmatprep.subr.mxu0 0.0
      %1717 = vmatpush1.msra.mxu0 0.0
      %1718 = vmatprep.subr.mxu0 0.0
      %1719 = vmatpush1.msra.mxu0 0.0
      %1720 = vmatprep.subr.mxu0 0.0
      %1721 = vmatpush1.msra.mxu0 0.0
      %1722 = vmatprep.subr.mxu0 0.0
      %1723 = vmatpush1.msra.mxu0 0.0
      %1724 = vmatprep.subr.mxu0 0.0
      %1725 = vmatpush1.msra.mxu0 0.0
      %1726 = vmatprep.subr.mxu0 0.0
      %1727 = vmatpush1.msra.mxu0 0.0
      %1728 = vmatprep.subr.mxu0 0.0
      %1729 = vmatpush1.msra.mxu0 0.0
      %1730 = vmatprep.subr.mxu0 0.0
      %1731 = vmatpush1.msra.mxu0 0.0
      %1732 = vmatprep.subr.mxu0 0.0
      %1733 = vmatpush1.msra.mxu0 0.0
      %1734 = vmatprep.subr.mxu0 0.0
      %1735 = vmatpush1.msra.mxu0 0.0
      %1736 = vmatprep.subr.mxu0 0.0
      %1737 = vmatpush1.msra.mxu0 0.0
      %1738 = vmatprep.subr.mxu0 0.0
      %1739 = vmatpush1.msra.mxu0 0.0
      %1740 = vmatprep.subr.mxu0 0.0
      %1741 = vmatpush1.msra.mxu0 0.0
      %1742 = vmatprep.subr.mxu0 0.0
      %1743 = vmatpush1.msra.mxu0 0.0
      %1744 = vmatprep.subr.mxu0 0.0
      %1745 = vmatpush1.msra.mxu0 0.0
      %1746 = vmatprep.subr.mxu0 0.0
      %1747 = vmatpush1.msra.mxu0 0.0
      %1748 = vmatprep.subr.mxu0 0.0
      %1749 = vmatpush1.msra.mxu0 0.0
      %1750 = vmatprep.subr.mxu0 0.0
      %1751 = vmatpush1.msra.mxu0 0.0
      %1752 = vmatprep.subr.mxu0 0.0
      %1753 = vmatpush1.msra.mxu0 0.0
      %1754 = vmatprep.subr.mxu0 0.0
      %1755 = vmatpush1.msra.mxu0 0.0
      %1756 = vmatprep.subr.mxu0 0.0
      %1757 = vmatpush1.msra.mxu0 0.0
      %1758 = vmatprep.subr.mxu0 0.0
      %1759 = vmatpush1.msra.mxu0 0.0
      %1760 = vmatprep.subr.mxu0 0.0
      %1761 = vmatpush1.msra.mxu0 0.0
      %1762 = vmatprep.mubr.f32.mxu0 0.0
      %1763 = vmatmul.mubr.f32.gmra.mrb[0].mxu0 %v1696
      %v1764 = vpop.f32.mrb[0].mxu0
      %v1765 = vadd.f32 0.0, %v1764
      %v1766 = vpop.f32.mrb[0].mxu0
      %1767 = vdwg.mxu0
      %v1769 = vsel %vm879, %v1765, 0
      %1771 = vmatprep.subr.mxu0 0.0
      %1772 = vmatpush1.msra.mxu0 %v874
      %1773 = vmatprep.subr.mxu0 0.0
      %1774 = vmatpush1.msra.mxu0 0.0
      %1775 = vmatprep.subr.mxu0 0.0
      %1776 = vmatpush1.msra.mxu0 0.0
      %1777 = vmatprep.subr.mxu0 0.0
      %1778 = vmatpush1.msra.mxu0 0.0
      %1779 = vmatprep.subr.mxu0 0.0
      %1780 = vmatpush1.msra.mxu0 0.0
      %1781 = vmatprep.subr.mxu0 0.0
      %1782 = vmatpush1.msra.mxu0 0.0
      %1783 = vmatprep.subr.mxu0 0.0
      %1784 = vmatpush1.msra.mxu0 0.0
      %1785 = vmatprep.subr.mxu0 0.0
      %1786 = vmatpush1.msra.mxu0 0.0
      %1787 = vmatprep.subr.mxu0 0.0
      %1788 = vmatpush1.msra.mxu0 0.0
      %1789 = vmatprep.subr.mxu0 0.0
      %1790 = vmatpush1.msra.mxu0 0.0
      %1791 = vmatprep.subr.mxu0 0.0
      %1792 = vmatpush1.msra.mxu0 0.0
      %1793 = vmatprep.subr.mxu0 0.0
      %1794 = vmatpush1.msra.mxu0 0.0
      %1795 = vmatprep.subr.mxu0 0.0
      %1796 = vmatpush1.msra.mxu0 0.0
      %1797 = vmatprep.subr.mxu0 0.0
      %1798 = vmatpush1.msra.mxu0 0.0
      %1799 = vmatprep.subr.mxu0 0.0
      %1800 = vmatpush1.msra.mxu0 0.0
      %1801 = vmatprep.subr.mxu0 0.0
      %1802 = vmatpush1.msra.mxu0 0.0
      %1803 = vmatprep.subr.mxu0 0.0
      %1804 = vmatpush1.msra.mxu0 0.0
      %1805 = vmatprep.subr.mxu0 0.0
      %1806 = vmatpush1.msra.mxu0 0.0
      %1807 = vmatprep.subr.mxu0 0.0
      %1808 = vmatpush1.msra.mxu0 0.0
      %1809 = vmatprep.subr.mxu0 0.0
      %1810 = vmatpush1.msra.mxu0 0.0
      %1811 = vmatprep.subr.mxu0 0.0
      %1812 = vmatpush1.msra.mxu0 0.0
      %1813 = vmatprep.subr.mxu0 0.0
      %1814 = vmatpush1.msra.mxu0 0.0
      %1815 = vmatprep.subr.mxu0 0.0
      %1816 = vmatpush1.msra.mxu0 0.0
      %1817 = vmatprep.subr.mxu0 0.0
      %1818 = vmatpush1.msra.mxu0 0.0
      %1819 = vmatprep.subr.mxu0 0.0
      %1820 = vmatpush1.msra.mxu0 0.0
      %1821 = vmatprep.subr.mxu0 0.0
      %1822 = vmatpush1.msra.mxu0 0.0
      %1823 = vmatprep.subr.mxu0 0.0
      %1824 = vmatpush1.msra.mxu0 0.0
      %1825 = vmatprep.subr.mxu0 0.0
      %1826 = vmatpush1.msra.mxu0 0.0
      %1827 = vmatprep.subr.mxu0 0.0
      %1828 = vmatpush1.msra.mxu0 0.0
      %1829 = vmatprep.subr.mxu0 0.0
      %1830 = vmatpush1.msra.mxu0 0.0
      %1831 = vmatprep.subr.mxu0 0.0
      %1832 = vmatpush1.msra.mxu0 0.0
      %1833 = vmatprep.subr.mxu0 0.0
      %1834 = vmatpush1.msra.mxu0 0.0
      %1835 = vmatprep.mubr.f32.mxu0 0.0
      %1836 = vmatmul.mubr.f32.gmra.mrb[0].mxu0 %v1769
      %v1837 = vpop.f32.mrb[0].mxu0
      %v1838 = vadd.f32 0.0, %v1837
      %v1839 = vpop.f32.mrb[0].mxu0
      %1840 = vdwg.mxu0
      %v1841 = vadd.f32 %v1601, %v1838
      %v1842 = vadd.f32 %v785, %v1841
      %v1843 = vld [vmem:[%s718] sm:$0x1]
      %v1844 = vld [vmem:[%s721] sm:$0x1]
      %v1845 = vsel %vm797, %v1842, 0.0
      %1846 = vadd.xlane.f32.xlu0 %v1845
      %v1847 = vpop.xlane.xlu0 %1846
      %v1848 = vrcp.pop 32.0
      %v1849 = vmul.f32 %v1847, %v1848
      %v1850 = vsub.f32 %v1842, %v1849
      %v1851 = vmul.f32 %v1850, %v1850
      %v1852 = vsel %vm797, %v1851, 0.0
      %1853 = vadd.xlane.f32.xlu0 %v1852
      %v1854 = vpop.xlane.xlu0 %1853
      %v1855 = vmul.f32 %v1854, %v1848
      %v1856 = vadd.f32 %v1855, 1e-12
      %v1857 = vrsqrt.pop %v1856
      %v1858 = vmul.f32 %v1850, %v1857
      %v1860 = vlaneseq
      %v1861 = vshrl.u32 %v1860, 7
      %v1862 = vsub.s32 0, %v1861
      %v1863 = vrot.slane %v1843, %v1862
      %v1865 = vmul.f32 %v1858, %v1863
      %v1867 = vlaneseq
      %v1868 = vshrl.u32 %v1867, 7
      %v1869 = vsub.s32 0, %v1868
      %v1870 = vrot.slane %v1844, %v1869
      %v1872 = vadd.f32 %v1865, %v1870
      %v1873 = vld [vmem:[%s726] sm:$0xff]
      %v1874 = vld [vmem:[%s726 + $0x8] sm:$0xff]
      %v1875 = vld [vmem:[%s726 + $0x10] sm:$0xff]
      %v1876 = vld [vmem:[%s726 + $0x18] sm:$0xff]
      %v1877 = vld [vmem:[%s729] sm:$0x1]
      %v1879 = vlaneseq
      %v1880 = vshrl.u32 %v1879, 7
      %v1881 = vsub.s32 0, %v1880
      %v1882 = vrot.slane %v1877, %v1881
      %v1885 = vsel %vm797, %v1872, 0
      %1887 = vmatprep.subr.mxu0 0.0
      %1888 = vmatpush1.msra.mxu0 %v1873
      %1889 = vmatprep.subr.mxu0 0.0
      %1890 = vmatpush1.msra.mxu0 %v1874
      %1891 = vmatprep.subr.mxu0 0.0
      %1892 = vmatpush1.msra.mxu0 %v1875
      %1893 = vmatprep.subr.mxu0 0.0
      %1894 = vmatpush1.msra.mxu0 %v1876
      %1895 = vmatprep.subr.mxu0 0.0
      %1896 = vmatpush1.msra.mxu0 0.0
      %1897 = vmatprep.subr.mxu0 0.0
      %1898 = vmatpush1.msra.mxu0 0.0
      %1899 = vmatprep.subr.mxu0 0.0
      %1900 = vmatpush1.msra.mxu0 0.0
      %1901 = vmatprep.subr.mxu0 0.0
      %1902 = vmatpush1.msra.mxu0 0.0
      %1903 = vmatprep.subr.mxu0 0.0
      %1904 = vmatpush1.msra.mxu0 0.0
      %1905 = vmatprep.subr.mxu0 0.0
      %1906 = vmatpush1.msra.mxu0 0.0
      %1907 = vmatprep.subr.mxu0 0.0
      %1908 = vmatpush1.msra.mxu0 0.0
      %1909 = vmatprep.subr.mxu0 0.0
      %1910 = vmatpush1.msra.mxu0 0.0
      %1911 = vmatprep.subr.mxu0 0.0
      %1912 = vmatpush1.msra.mxu0 0.0
      %1913 = vmatprep.subr.mxu0 0.0
      %1914 = vmatpush1.msra.mxu0 0.0
      %1915 = vmatprep.subr.mxu0 0.0
      %1916 = vmatpush1.msra.mxu0 0.0
      %1917 = vmatprep.subr.mxu0 0.0
      %1918 = vmatpush1.msra.mxu0 0.0
      %1919 = vmatprep.subr.mxu0 0.0
      %1920 = vmatpush1.msra.mxu0 0.0
      %1921 = vmatprep.subr.mxu0 0.0
      %1922 = vmatpush1.msra.mxu0 0.0
      %1923 = vmatprep.subr.mxu0 0.0
      %1924 = vmatpush1.msra.mxu0 0.0
      %1925 = vmatprep.subr.mxu0 0.0
      %1926 = vmatpush1.msra.mxu0 0.0
      %1927 = vmatprep.subr.mxu0 0.0
      %1928 = vmatpush1.msra.mxu0 0.0
      %1929 = vmatprep.subr.mxu0 0.0
      %1930 = vmatpush1.msra.mxu0 0.0
      %1931 = vmatprep.subr.mxu0 0.0
      %1932 = vmatpush1.msra.mxu0 0.0
      %1933 = vmatprep.subr.mxu0 0.0
      %1934 = vmatpush1.msra.mxu0 0.0
      %1935 = vmatprep.subr.mxu0 0.0
      %1936 = vmatpush1.msra.mxu0 0.0
      %1937 = vmatprep.subr.mxu0 0.0
      %1938 = vmatpush1.msra.mxu0 0.0
      %1939 = vmatprep.subr.mxu0 0.0
      %1940 = vmatpush1.msra.mxu0 0.0
      %1941 = vmatprep.subr.mxu0 0.0
      %1942 = vmatpush1.msra.mxu0 0.0
      %1943 = vmatprep.subr.mxu0 0.0
      %1944 = vmatpush1.msra.mxu0 0.0
      %1945 = vmatprep.subr.mxu0 0.0
      %1946 = vmatpush1.msra.mxu0 0.0
      %1947 = vmatprep.subr.mxu0 0.0
      %1948 = vmatpush1.msra.mxu0 0.0
      %1949 = vmatprep.subr.mxu0 0.0
      %1950 = vmatpush1.msra.mxu0 0.0
      %1951 = vmatprep.mubr.f32.mxu0 0.0
      %1952 = vmatmul.mubr.f32.gmra.mrb[0].mxu0 %v1885
      %v1953 = vpop.f32.mrb[0].mxu0
      %v1954 = vadd.f32 %v1882, %v1953
      %v1955 = vpop.f32.mrb[0].mxu0
      %1956 = vdwg.mxu0
      %v1957 = vmul.f32 %v1954, %v1954
      %v1958 = vmul.f32 %v1954, %v1957
      %v1959 = vmul.f32 %v1958, 0.044715
      %v1960 = vadd.f32 %v1954, %v1959
      %v1961 = vmul.f32 %v1960, 0.7978846
      %v1962 = vtanh.pop %v1961
      %v1963 = vadd.f32 %v1962, 1.0
      %v1964 = vmul.f32 %v1963, 0.5
      %v1965 = vmul.f32 %v1954, %v1964
      %v1966 = vld [vmem:[%s734] sm:$0xff]
      %v1967 = vld [vmem:[%s734 + $0x8] sm:$0xff]
      %v1968 = vld [vmem:[%s734 + $0x10] sm:$0xff]
      %v1969 = vld [vmem:[%s734 + $0x18] sm:$0xff]
      %v1970 = vld [vmem:[%s734 + $0x20] sm:$0xff]
      %v1971 = vld [vmem:[%s734 + $0x28] sm:$0xff]
      %v1972 = vld [vmem:[%s734 + $0x30] sm:$0xff]
      %v1973 = vld [vmem:[%s734 + $0x38] sm:$0xff]
      %v1974 = vld [vmem:[%s737] sm:$0x1]
      %v1976 = vlaneseq
      %v1977 = vshrl.u32 %v1976, 7
      %v1978 = vsub.s32 0, %v1977
      %v1979 = vrot.slane %v1974, %v1978
      %vm1981 = vcmask 523264
      %v1983 = vsel %vm1981, %v1965, 0
      %1985 = vmatprep.subr.mxu0 0.0
      %1986 = vmatpush1.msra.mxu0 %v1966
      %1987 = vmatprep.subr.mxu0 0.0
      %1988 = vmatpush1.msra.mxu0 %v1967
      %1989 = vmatprep.subr.mxu0 0.0
      %1990 = vmatpush1.msra.mxu0 %v1968
      %1991 = vmatprep.subr.mxu0 0.0
      %1992 = vmatpush1.msra.mxu0 %v1969
      %1993 = vmatprep.subr.mxu0 0.0
      %1994 = vmatpush1.msra.mxu0 %v1970
      %1995 = vmatprep.subr.mxu0 0.0
      %1996 = vmatpush1.msra.mxu0 %v1971
      %1997 = vmatprep.subr.mxu0 0.0
      %1998 = vmatpush1.msra.mxu0 %v1972
      %1999 = vmatprep.subr.mxu0 0.0
      %2000 = vmatpush1.msra.mxu0 %v1973
      %2001 = vmatprep.subr.mxu0 0.0
      %2002 = vmatpush1.msra.mxu0 0.0
      %2003 = vmatprep.subr.mxu0 0.0
      %2004 = vmatpush1.msra.mxu0 0.0
      %2005 = vmatprep.subr.mxu0 0.0
      %2006 = vmatpush1.msra.mxu0 0.0
      %2007 = vmatprep.subr.mxu0 0.0
      %2008 = vmatpush1.msra.mxu0 0.0
      %2009 = vmatprep.subr.mxu0 0.0
      %2010 = vmatpush1.msra.mxu0 0.0
      %2011 = vmatprep.subr.mxu0 0.0
      %2012 = vmatpush1.msra.mxu0 0.0
      %2013 = vmatprep.subr.mxu0 0.0
      %2014 = vmatpush1.msra.mxu0 0.0
      %2015 = vmatprep.subr.mxu0 0.0
      %2016 = vmatpush1.msra.mxu0 0.0
      %2017 = vmatprep.subr.mxu0 0.0
      %2018 = vmatpush1.msra.mxu0 0.0
      %2019 = vmatprep.subr.mxu0 0.0
      %2020 = vmatpush1.msra.mxu0 0.0
      %2021 = vmatprep.subr.mxu0 0.0
      %2022 = vmatpush1.msra.mxu0 0.0
      %2023 = vmatprep.subr.mxu0 0.0
      %2024 = vmatpush1.msra.mxu0 0.0
      %2025 = vmatprep.subr.mxu0 0.0
      %2026 = vmatpush1.msra.mxu0 0.0
      %2027 = vmatprep.subr.mxu0 0.0
      %2028 = vmatpush1.msra.mxu0 0.0
      %2029 = vmatprep.subr.mxu0 0.0
      %2030 = vmatpush1.msra.mxu0 0.0
      %2031 = vmatprep.subr.mxu0 0.0
      %2032 = vmatpush1.msra.mxu0 0.0
      %2033 = vmatprep.subr.mxu0 0.0
      %2034 = vmatpush1.msra.mxu0 0.0
      %2035 = vmatprep.subr.mxu0 0.0
      %2036 = vmatpush1.msra.mxu0 0.0
      %2037 = vmatprep.subr.mxu0 0.0
      %2038 = vmatpush1.msra.mxu0 0.0
      %2039 = vmatprep.subr.mxu0 0.0
      %2040 = vmatpush1.msra.mxu0 0.0
      %2041 = vmatprep.subr.mxu0 0.0
      %2042 = vmatpush1.msra.mxu0 0.0
      %2043 = vmatprep.subr.mxu0 0.0
      %2044 = vmatpush1.msra.mxu0 0.0
      %2045 = vmatprep.subr.mxu0 0.0
      %2046 = vmatpush1.msra.mxu0 0.0
      %2047 = vmatprep.subr.mxu0 0.0
      %2048 = vmatpush1.msra.mxu0 0.0
      %2049 = vmatprep.mubr.f32.mxu0 0.0
      %2050 = vmatmul.mubr.f32.gmra.mrb[0].mxu0 %v1983
      %v2051 = vpop.f32.mrb[0].mxu0
      %v2052 = vadd.f32 %v1979, %v2051
      %v2053 = vpop.f32.mrb[0].mxu0
      %2054 = vdwg.mxu0
      %v2055 = vadd.f32 %v1872, %v2052
      %v2056 = vld [vmem:[%s740] sm:$0x1]
      %v2057 = vld [vmem:[%s743] sm:$0x1]
      %v2058 = vsel %vm797, %v2055, 0.0
      %2059 = vadd.xlane.f32.xlu0 %v2058
      %v2060 = vpop.xlane.xlu0 %2059
      %v2061 = vmul.f32 %v2060, %v1848
      %v2062 = vsub.f32 %v2055, %v2061
      %v2063 = vmul.f32 %v2062, %v2062
      %v2064 = vsel %vm797, %v2063, 0.0
      %2065 = vadd.xlane.f32.xlu0 %v2064
      %v2066 = vpop.xlane.xlu0 %2065
      %v2067 = vmul.f32 %v2066, %v1848
      %v2068 = vadd.f32 %v2067, 1e-12
      %v2069 = vrsqrt.pop %v2068
      %v2070 = vmul.f32 %v2062, %v2069
      %v2072 = vlaneseq
      %v2073 = vshrl.u32 %v2072, 7
      %v2074 = vsub.s32 0, %v2073
      %v2075 = vrot.slane %v2056, %v2074
      %v2077 = vmul.f32 %v2070, %v2075
      %v2079 = vlaneseq
      %v2080 = vshrl.u32 %v2079, 7
      %v2081 = vsub.s32 0, %v2080
      %v2082 = vrot.slane %v2057, %v2081
      %v2084 = vadd.f32 %v2077, %v2082
      %2085 = vst.msk [vmem:[#allocation2] sm:$0xff] %vm797, %v2084
      %p2086 = scmp.eq.s32.totalorder %s33, 1
      // Predicated region
      $region93: #{bert_tagger_forward.1} parent=87 // pred_check
        %p2087 = pneg %p2086
      $region94: #{bert_tagger_forward.1} parent=87 // pred_check_branch
        %2089 = sbr.rel (%p2087) target = $region96
      $region95: #{bert_tagger_forward.1} parent=87 // pred_region
        %v2090 = vld [vmem:[%s15] sm:$0xff]
        %v2091 = vld [vmem:[%s15 + $0x8] sm:$0xff]
        %v2092 = vld [vmem:[%s15 + $0x10] sm:$0xff]
        %v2093 = vld [vmem:[%s15 + $0x18] sm:$0xff]
        %v2094 = vld [vmem:[%s16] sm:$0x1]
        %v2096 = vlaneseq
        %v2097 = vshrl.u32 %v2096, 7
        %v2098 = vsub.s32 0, %v2097
        %v2099 = vrot.slane %v2094, %v2098
        %v2102 = vsel %vm797, %v2084, 0
        %2104 = vmatprep.subr.mxu0 0.0
        %2105 = vmatpush1.msra.mxu0 %v2090
        %2106 = vmatprep.subr.mxu0 0.0
        %2107 = vmatpush1.msra.mxu0 %v2091
        %2108 = vmatprep.subr.mxu0 0.0
        %2109 = vmatpush1.msra.mxu0 %v2092
        %2110 = vmatprep.subr.mxu0 0.0
        %2111 = vmatpush1.msra.mxu0 %v2093
        %2112 = vmatprep.subr.mxu0 0.0
        %2113 = vmatpush1.msra.mxu0 0.0
        %2114 = vmatprep.subr.mxu0 0.0
        %2115 = vmatpush1.msra.mxu0 0.0
        %2116 = vmatprep.subr.mxu0 0.0
        %2117 = vmatpush1.msra.mxu0 0.0
        %2118 = vmatprep.subr.mxu0 0.0
        %2119 = vmatpush1.msra.mxu0 0.0
        %2120 = vmatprep.subr.mxu0 0.0
        %2121 = vmatpush1.msra.mxu0 0.0
        %2122 = vmatprep.subr.mxu0 0.0
        %2123 = vmatpush1.msra.mxu0 0.0
        %2124 = vmatprep.subr.mxu0 0.0
        %2125 = vmatpush1.msra.mxu0 0.0
        %2126 = vmatprep.subr.mxu0 0.0
        %2127 = vmatpush1.msra.mxu0 0.0
        %2128 = vmatprep.subr.mxu0 0.0
        %2129 = vmatpush1.msra.mxu0 0.0
        %2130 = vmatprep.subr.mxu0 0.0
        %2131 = vmatpush1.msra.mxu0 0.0
        %2132 = vmatprep.subr.mxu0 0.0
        %2133 = vmatpush1.msra.mxu0 0.0
        %2134 = vmatprep.subr.mxu0 0.0
        %2135 = vmatpush1.msra.mxu0 0.0
        %2136 = vmatprep.subr.mxu0 0.0
        %2137 = vmatpush1.msra.mxu0 0.0
        %2138 = vmatprep.subr.mxu0 0.0
        %2139 = vmatpush1.msra.mxu0 0.0
        %2140 = vmatprep.subr.mxu0 0.0
        %2141 = vmatpush1.msra.mxu0 0.0
        %2142 = vmatprep.subr.mxu0 0.0
        %2143 = vmatpush1.msra.mxu0 0.0
        %2144 = vmatprep.subr.mxu0 0.0
        %2145 = vmatpush1.msra.mxu0 0.0
        %2146 = vmatprep.subr.mxu0 0.0
        %2147 = vmatpush1.msra.mxu0 0.0
        %2148 = vmatprep.subr.mxu0 0.0
        %2149 = vmatpush1.msra.mxu0 0.0
        %2150 = vmatprep.subr.mxu0 0.0
        %2151 = vmatpush1.msra.mxu0 0.0
        %2152 = vmatprep.subr.mxu0 0.0
        %2153 = vmatpush1.msra.mxu0 0.0
        %2154 = vmatprep.subr.mxu0 0.0
        %2155 = vmatpush1.msra.mxu0 0.0
        %2156 = vmatprep.subr.mxu0 0.0
        %2157 = vmatpush1.msra.mxu0 0.0
        %2158 = vmatprep.subr.mxu0 0.0
        %2159 = vmatpush1.msra.mxu0 0.0
        %2160 = vmatprep.subr.mxu0 0.0
        %2161 = vmatpush1.msra.mxu0 0.0
        %2162 = vmatprep.subr.mxu0 0.0
        %2163 = vmatpush1.msra.mxu0 0.0
        %2164 = vmatprep.subr.mxu0 0.0
        %2165 = vmatpush1.msra.mxu0 0.0
        %2166 = vmatprep.subr.mxu0 0.0
        %2167 = vmatpush1.msra.mxu0 0.0
        %2168 = vmatprep.mubr.f32.mxu0 0.0
        %2169 = vmatmul.mubr.f32.gmra.mrb[0].mxu0 %v2102
        %v2170 = vpop.f32.mrb[0].mxu0
        %v2171 = vadd.f32 %v2099, %v2170
        %v2172 = vpop.f32.mrb[0].mxu0
        %2173 = vdwg.mxu0
        %2174 = vst [vmem:[%s747] sm:$0xff] %v2171
      $region96: #{bert_tagger_forward.1} parent=87 // pred_fallthru
        _
      %p2175 = scmp.lt.s32.totalorder %s32, 1
      %s2176 = scalar_select %p2175, %s32, 1
      %s2177 = smul.addr %s2176, 8
      %s2178 = scalar_lea.vmem %s17, %s2177
      // Predicated region
      $region97: #{bert_tagger_forward.1} parent=87 // pred_check
        %p2179 = pneg %p480
      $region98: #{bert_tagger_forward.1} parent=87 // pred_check_branch
        %2181 = sbr.rel (%p2179) target = $region100
      $region99: #{bert_tagger_forward.1} parent=87 // pred_region
        _
      $region100: #{bert_tagger_forward.1} parent=87 // pred_fallthru
        _
    $region88: #{bert_tagger_forward.1} parent=5 // pred_fallthru
      _
    %p2182 = scmp.le.s32.totalorder 2, %s23
    // Predicated region
    $region101: #{bert_tagger_forward.1} parent=5 // pred_check
      %p2183 = pneg %p2182
    $region102: #{bert_tagger_forward.1} parent=5 // pred_check_branch
      %2185 = sbr.rel (%p2183) target = $region104
    $region103: #{bert_tagger_forward.1} parent=5 // pred_region
      %s2186 = ssub.s32 %s23, 2
      // Predicated region
      $region105: #{bert_tagger_forward.1} parent=103 // pred_check
        %p2187 = pneg %p486
      $region106: #{bert_tagger_forward.1} parent=103 // pred_check_branch
        %2189 = sbr.rel (%p2187) target = $region108
      $region107: #{bert_tagger_forward.1} parent=103 // pred_region
        %p2190 = scmp.lt.s32.totalorder %s34, 1
        %s2191 = scalar_select %p2190, %s34, 1
        %s2192 = smul.addr %s2191, 8
        %s2193 = scalar_lea.vmem %s17, %s2192
      $region108: #{bert_tagger_forward.1} parent=103 // pred_fallthru
        _
    $region104: #{bert_tagger_forward.1} parent=5 // pred_fallthru
      _
  $region6: #{bert_tagger_forward.1} parent=0 // loop_footer
    %s27 = sadd.s32 1, %s23
  $region7: #{bert_tagger_forward.1} parent=0 // loop_footer_branch
    %22 = sbr.rel target = $region3
  $region8: #{bert_tagger_forward.1} parent=0 // loop_exit
    _

</llo_original>
